<compile_context>
chip_gen: v7x
topology: tpu7x:2x2x1
jax: 0.10.0
libtpu: 0.0.40
codegen_flags: <defaults>
</compile_context>

<pallas_src>
import jax
import jax.numpy as jnp
from jax import lax
from jax.experimental import pallas as pl
from jax.experimental.pallas import tpu as pltpu
import numpy as np


# ----------------------------------------------------------------------------
# Fused kernel factory: cv1 -> cv2 -> SGE (+ optional residual), one batch
# element per grid step.  All static shape parameters are baked in.
# ----------------------------------------------------------------------------
def _make_fused_kernel(Cmid, C2, G, H, W, pad_l, add):
    HW = H * W

    def kernel(x_ref, w1_ref, sh1_ref, w2_ref, sh2_ref,
               gm_gc_ref, gm_cg_ref, mask_ref, sgw_ref, sgb_ref,
               o_ref, y1pad_ref, patch_ref):
        x = x_ref[0]                                              # (C1, HW)

        # ---- cv1: 1x1 conv (BN scale folded) + shift + SiLU -----------------
        y1 = jnp.dot(w1_ref[...], x, preferred_element_type=jnp.float32)
        y1 = y1 + sh1_ref[...]
        y1 = y1 * jax.nn.sigmoid(y1)                              # (Cmid, HW)

        # ---- stage y1 in a lane-padded VMEM scratch so each 3x3 tap is a
        #      static lane-offset slice (implicit zero padding, no jnp.pad).
        #      Pads are re-zeroed every step (one vreg column each side) so
        #      the kernel stays correct if the batch grid is core-sharded.  --
        zeros_pad = jnp.zeros((Cmid, pad_l), jnp.float32)
        y1pad_ref[:, pl.ds(0, pad_l)] = zeros_pad
        y1pad_ref[:, pl.ds(pad_l + HW, pad_l)] = zeros_pad
        y1pad_ref[:, pl.ds(pad_l, HW)] = y1

        # ---- im2col: patch[tap*Cmid + ci, hw] = y1[ci, hw + shift] * mask --
        for dy in range(3):
            for dx in range(3):
                tap = dy * 3 + dx
                shift = (dy - 1) * W + (dx - 1)
                shifted = y1pad_ref[:, pl.ds(pad_l + shift, HW)]  # (Cmid, HW)
                if dx != 1:
                    # column wrap across rows -> needs the validity mask
                    shifted = shifted * mask_ref[pl.ds(tap, 1), :]
                # dx == 1 taps only shift vertically: zero pad already covers
                # the out-of-range rows, no mask multiply needed.
                patch_ref[pl.ds(tap * Cmid, Cmid), :] = shifted

        # ---- cv2: single big-K MXU contraction (BN scale folded) + SiLU ----
        y2 = jnp.dot(w2_ref[...], patch_ref[...],
                     preferred_element_type=jnp.float32)          # (C2, HW)
        y2 = y2 + sh2_ref[...]
        y2 = y2 * jax.nn.sigmoid(y2)

        # ---- SpatialGroupEnhance (groups=G), channel-major layout ----------
        chan_mean = jnp.mean(y2, axis=1, keepdims=True)           # avg_pool(1)
        prod = y2 * chan_mean                                     # x * avg_pool(x)
        # per-group channel sum: (G, C2) @ (C2, HW) -> (G, HW)   (lane dense)
        xn = jnp.dot(gm_gc_ref[...], prod, preferred_element_type=jnp.float32)
        t = xn - jnp.mean(xn, axis=1, keepdims=True)
        var = jnp.sum(t * t, axis=1, keepdims=True) * (1.0 / (HW - 1))
        std = jnp.sqrt(var) + 1e-5                                # torch .std (unbiased)
        t = t * (1.0 / std)
        t = t * sgw_ref[...] + sgb_ref[...]
        gate = jax.nn.sigmoid(t)                                  # (G, HW)
        # broadcast group gate back to channels: (C2, G) @ (G, HW) -> (C2, HW)
        gate_c = jnp.dot(gm_cg_ref[...], gate, preferred_element_type=jnp.float32)
        out = y2 * gate_c
        if add:
            out = out + x                                         # residual
        o_ref[0] = out

    return kernel


# ----------------------------------------------------------------------------
# Wrapper: NCHW in / NCHW out (PyTorch layout), flattened to (B, C, H*W).
# ----------------------------------------------------------------------------
def sge_bottleneck_pallas(x_nchw, p):
    B, C1, H, W = x_nchw.shape
    HW = H * W
    Cmid = p["w1"].shape[0]
    C2 = p["w2_oihw"].shape[0]
    G = p["groups"]
    add = p["add"]
    assert C2 % G == 0

    x_flat = x_nchw.reshape(B, C1, HW)

    # Fold BN scale into the conv weights (host side, once).
    w1_f = p["w1"] * p["s1"][:, None]                             # (Cmid, C1)
    w2_f = p["w2_oihw"] * p["s2"][:, None, None, None]            # (C2, Cmid, 3, 3)
    # OIHW -> (C2, 9*Cmid) with column order (dy*3+dx)*Cmid + ci
    w2_flat = w2_f.transpose(0, 2, 3, 1).reshape(C2, 9 * Cmid)

    # group indicator matrices (channel c belongs to group c // (C2//G))
    CG = C2 // G
    gm_cg = (jnp.arange(C2)[:, None] // CG ==
             jnp.arange(G)[None, :]).astype(jnp.float32)          # (C2, G)
    gm_gc = gm_cg.T                                               # (G, C2)

    # per-tap validity masks (implements the conv's zero padding for dx != 1)
    hh = jnp.arange(H)[:, None]
    ww = jnp.arange(W)[None, :]
    mrows = []
    for dy in range(3):
        for dx in range(3):
            valid = ((hh + dy - 1 >= 0) & (hh + dy - 1 < H) &
                     (ww + dx - 1 >= 0) & (ww + dx - 1 < W))
            mrows.append(valid.reshape(HW))
    mask = jnp.stack(mrows).astype(jnp.float32)                   # (9, HW)

    pad_l = ((W + 1 + 127) // 128) * 128                          # lane pad (aligned)
    hwp = HW + 2 * pad_l

    kernel = _make_fused_kernel(Cmid, C2, G, H, W, pad_l, add)
    out = pl.pallas_call(
        kernel,
        out_shape=jax.ShapeDtypeStruct((B, C2, HW), jnp.float32),
        grid=(B,),
        in_specs=[
            pl.BlockSpec((1, C1, HW), lambda b: (b, 0, 0)),        # x
            pl.BlockSpec((Cmid, C1), lambda b: (0, 0)),            # w1 (BN folded)
            pl.BlockSpec((Cmid, 1), lambda b: (0, 0)),             # bn1 shift
            pl.BlockSpec((C2, 9 * Cmid), lambda b: (0, 0)),        # w2 (im2col, BN folded)
            pl.BlockSpec((C2, 1), lambda b: (0, 0)),               # bn2 shift
            pl.BlockSpec((G, C2), lambda b: (0, 0)),               # group sum mat
            pl.BlockSpec((C2, G), lambda b: (0, 0)),               # group bcast mat
            pl.BlockSpec((9, HW), lambda b: (0, 0)),               # tap masks
            pl.BlockSpec((G, 1), lambda b: (0, 0)),                # sge weight
            pl.BlockSpec((G, 1), lambda b: (0, 0)),                # sge bias
        ],
        out_specs=pl.BlockSpec((1, C2, HW), lambda b: (b, 0, 0)),
        scratch_shapes=[
            pltpu.VMEM((Cmid, hwp), jnp.float32),                  # lane-padded y1
            pltpu.VMEM((9 * Cmid, HW), jnp.float32),               # im2col patches
        ],
        compiler_params=pltpu.CompilerParams(
            dimension_semantics=("parallel",)),
    )(x_flat, w1_f, p["sh1"].reshape(Cmid, 1),
      w2_flat, p["sh2"].reshape(C2, 1),
      gm_gc, gm_cg, mask,
      p["sge_w"].reshape(G, 1), p["sge_b"].reshape(G, 1))
    return out.reshape(B, C2, H, W)


# ----------------------------------------------------------------------------
# Pure-JAX reference (NCHW, mirrors the PyTorch module).
# ----------------------------------------------------------------------------
def sge_bottleneck_ref(x, p):
    # cv1
    y = jnp.einsum("oi,bihw->bohw", p["w1"], x)
    y = y * p["s1"][None, :, None, None] + p["sh1"][None, :, None, None]
    y = y * jax.nn.sigmoid(y)
    # cv2
    y = lax.conv_general_dilated(y, p["w2_oihw"], (1, 1), ((1, 1), (1, 1)),
                                 dimension_numbers=("NCHW", "OIHW", "NCHW"))
    y = y * p["s2"][None, :, None, None] + p["sh2"][None, :, None, None]
    y = y * jax.nn.sigmoid(y)
    # SpatialGroupEnhance
    B, C, H, W = y.shape
    G = p["groups"]
    CG = C // G
    yg = y.reshape(B * G, CG, H * W)
    cm = jnp.mean(yg, axis=2, keepdims=True)
    xn = jnp.sum(yg * cm, axis=1)                                  # (B*G, HW)
    t = xn - jnp.mean(xn, axis=1, keepdims=True)
    std = jnp.std(xn, axis=1, keepdims=True, ddof=1) + 1e-5        # torch .std
    t = t / std
    t = t.reshape(B, G, H * W) * p["sge_w"][None, :, None] + p["sge_b"][None, :, None]
    gate = jax.nn.sigmoid(t).reshape(B * G, 1, H * W)
    out = (yg * gate).reshape(B, C, H, W)
    return x + out if p["add"] else out


# ----------------------------------------------------------------------------
# Parameter construction (BN folded to scale/shift).
# ----------------------------------------------------------------------------
def make_params(key, c1, c2, e=0.5, groups=8, shortcut=True):
    c_ = int(c2 * e)
    ks = jax.random.split(key, 12)
    eps = 1e-5
    # cv1: Conv2d(c1, c_, 1, bias=False) + BN(c_)
    w1 = jax.random.normal(ks[0], (c_, c1), jnp.float32) * (2.0 / c1) ** 0.5
    g1 = 1.0 + 0.1 * jax.random.normal(ks[1], (c_,), jnp.float32)
    b1 = 0.1 * jax.random.normal(ks[2], (c_,), jnp.float32)
    m1 = 0.1 * jax.random.normal(ks[3], (c_,), jnp.float32)
    v1 = 0.5 + jnp.abs(jax.random.normal(ks[4], (c_,), jnp.float32)) * 0.5
    s1 = g1 / jnp.sqrt(v1 + eps)
    sh1 = b1 - m1 * s1
    # cv2: Conv2d(c_, c2, 3, pad=1, bias=False) + BN(c2), weights OIHW
    w2 = jax.random.normal(ks[5], (c2, c_, 3, 3), jnp.float32) * (2.0 / (9 * c_)) ** 0.5
    g2 = 1.0 + 0.1 * jax.random.normal(ks[6], (c2,), jnp.float32)
    b2 = 0.1 * jax.random.normal(ks[7], (c2,), jnp.float32)
    m2 = 0.1 * jax.random.normal(ks[8], (c2,), jnp.float32)
    v2 = 0.5 + jnp.abs(jax.random.normal(ks[9], (c2,), jnp.float32)) * 0.5
    s2 = g2 / jnp.sqrt(v2 + eps)
    sh2 = b2 - m2 * s2
    # SGE affine params (module inits to zero; use small nonzero values so the
    # full gating path is exercised numerically)
    sge_w = 0.5 * jax.random.normal(ks[10], (groups,), jnp.float32)
    sge_b = 0.1 * jax.random.normal(ks[11], (groups,), jnp.float32)
    return {
        "w1": w1, "s1": s1, "sh1": sh1,
        "w2_oihw": w2, "s2": s2, "sh2": sh2,
        "sge_w": sge_w, "sge_b": sge_b,
        "groups": groups, "add": bool(shortcut and c1 == c2),
    }


if __name__ == "__main__":
    key = jax.random.PRNGKey(0)
    kx, kp = jax.random.split(key)

    # PyTorch NCHW input; channels divisible by the 8 SGE groups.
    B, C1, C2, H, W = 2, 16, 16, 16, 16
    x = jax.random.normal(kx, (B, C1, H, W), jnp.float32)
    params = make_params(kp, C1, C2)

    out = jax.block_until_ready(sge_bottleneck_pallas(x, params))
    ref = jax.block_until_ready(sge_bottleneck_ref(x, params))
    np.testing.assert_allclose(np.asarray(out), np.asarray(ref),
                               rtol=1e-4, atol=1e-4)

    print("KERNEL_OK")
</pallas_src>

<mosaic_0001>
module attributes {stable_mosaic.version = 11 : i64} {
  func.func @kernel(%arg0: i32, %arg1: memref<1x16x256xf32, #tpu.memory_space<vmem>>, %arg2: memref<8x16xf32, #tpu.memory_space<vmem>>, %arg3: memref<8x1xf32, #tpu.memory_space<vmem>>, %arg4: memref<16x72xf32, #tpu.memory_space<vmem>>, %arg5: memref<16x1xf32, #tpu.memory_space<vmem>>, %arg6: memref<8x16xf32, #tpu.memory_space<vmem>>, %arg7: memref<16x8xf32, #tpu.memory_space<vmem>>, %arg8: memref<9x256xf32, #tpu.memory_space<vmem>>, %arg9: memref<8x1xf32, #tpu.memory_space<vmem>>, %arg10: memref<8x1xf32, #tpu.memory_space<vmem>>, %arg11: memref<1x16x256xf32, #tpu.memory_space<vmem>>, %arg12: memref<8x512xf32, #tpu.memory_space<vmem>>, %arg13: memref<72x256xf32, #tpu.memory_space<vmem>>) attributes {dimension_semantics = [#tpu.dimension_semantics<parallel>], iteration_bounds = array<i64: 2>, scalar_prefetch = 0 : i64, scratch_operands = 2 : i64, tpu.core_type = #tpu.core_type<tc>, window_params = [{transform_indices = @transform_0, window_bounds = array<i64: 1, 16, 256>}, {pipeline_mode = #tpu.pipeline_mode<synchronous>, transform_indices = @transform_1, window_bounds = array<i64: 8, 16>}, {pipeline_mode = #tpu.pipeline_mode<synchronous>, transform_indices = @transform_2, window_bounds = array<i64: 8, 1>}, {pipeline_mode = #tpu.pipeline_mode<synchronous>, transform_indices = @transform_3, window_bounds = array<i64: 16, 72>}, {pipeline_mode = #tpu.pipeline_mode<synchronous>, transform_indices = @transform_4, window_bounds = array<i64: 16, 1>}, {pipeline_mode = #tpu.pipeline_mode<synchronous>, transform_indices = @transform_5, window_bounds = array<i64: 8, 16>}, {pipeline_mode = #tpu.pipeline_mode<synchronous>, transform_indices = @transform_6, window_bounds = array<i64: 16, 8>}, {pipeline_mode = #tpu.pipeline_mode<synchronous>, transform_indices = @transform_7, window_bounds = array<i64: 9, 256>}, {pipeline_mode = #tpu.pipeline_mode<synchronous>, transform_indices = @transform_8, window_bounds = array<i64: 8, 1>}, {pipeline_mode = #tpu.pipeline_mode<synchronous>, transform_indices = @transform_9, window_bounds = array<i64: 8, 1>}, {transform_indices = @transform_10, window_bounds = array<i64: 1, 16, 256>}]} {
    %c0 = arith.constant 0 : index
    %c0_0 = arith.constant 0 : index
    %c0_1 = arith.constant 0 : index
    %0 = vector.load %arg1[%c0, %c0_0, %c0_1] : memref<1x16x256xf32, #tpu.memory_space<vmem>>, vector<1x16x256xf32>
    %1 = vector.shape_cast %0 : vector<1x16x256xf32> to vector<16x256xf32>
    %c0_2 = arith.constant 0 : index
    %c0_3 = arith.constant 0 : index
    %2 = vector.load %arg2[%c0_2, %c0_3] : memref<8x16xf32, #tpu.memory_space<vmem>>, vector<8x16xf32>
    %cst = arith.constant dense<0.000000e+00> : vector<8x256xf32>
    %3 = tpu.matmul %2, %1, %cst {dimension_numbers = #tpu.dot_dimension_numbers<[1], [0], [0], [1], [0, 0, 1, 1], [], []>} : vector<8x16xf32>, vector<16x256xf32>, vector<8x256xf32> -> vector<8x256xf32>
    %c0_4 = arith.constant 0 : index
    %c0_5 = arith.constant 0 : index
    %4 = vector.load %arg3[%c0_4, %c0_5] : memref<8x1xf32, #tpu.memory_space<vmem>>, vector<8x1xf32>
    %5 = vector.broadcast %4 : vector<8x1xf32> to vector<8x256xf32>
    %6 = arith.addf %3, %5 : vector<8x256xf32>
    %7 = arith.negf %6 : vector<8x256xf32>
    %8 = math.exp %7 : vector<8x256xf32>
    %cst_6 = arith.constant 1.000000e+00 : f32
    %9 = vector.broadcast %cst_6 : f32 to vector<8x256xf32>
    %10 = arith.addf %9, %8 : vector<8x256xf32>
    %11 = arith.divf %9, %10 : vector<8x256xf32>
    %12 = arith.mulf %6, %11 : vector<8x256xf32>
    %cst_7 = arith.constant 0.000000e+00 : f32
    %13 = vector.broadcast %cst_7 : f32 to vector<8x128xf32>
    %c0_8 = arith.constant 0 : index
    %c0_9 = arith.constant 0 : index
    %14 = vector.load %arg12[%c0_8, %c0_9] : memref<8x512xf32, #tpu.memory_space<vmem>>, vector<8x128xf32>
    tpu.vector_store %arg12[%c0_8, %c0_9], %13 {strides = array<i32>} : memref<8x512xf32, #tpu.memory_space<vmem>>, vector<8x128xf32>,
    %c0_10 = arith.constant 0 : index
    %c384 = arith.constant 384 : index
    %15 = vector.load %arg12[%c0_10, %c384] : memref<8x512xf32, #tpu.memory_space<vmem>>, vector<8x128xf32>
    tpu.vector_store %arg12[%c0_10, %c384], %13 {strides = array<i32>} : memref<8x512xf32, #tpu.memory_space<vmem>>, vector<8x128xf32>,
    %c0_11 = arith.constant 0 : index
    %c128 = arith.constant 128 : index
    %16 = vector.load %arg12[%c0_11, %c128] : memref<8x512xf32, #tpu.memory_space<vmem>>, vector<8x256xf32>
    tpu.vector_store %arg12[%c0_11, %c128], %12 {strides = array<i32>} : memref<8x512xf32, #tpu.memory_space<vmem>>, vector<8x256xf32>,
    %c0_12 = arith.constant 0 : index
    %c111 = arith.constant 111 : index
    %17 = vector.load %arg12[%c0_12, %c111] : memref<8x512xf32, #tpu.memory_space<vmem>>, vector<8x256xf32>
    %c0_13 = arith.constant 0 : index
    %c0_14 = arith.constant 0 : index
    %18 = vector.load %arg8[%c0_13, %c0_14] : memref<9x256xf32, #tpu.memory_space<vmem>>, vector<1x256xf32>
    %19 = vector.broadcast %18 : vector<1x256xf32> to vector<8x256xf32>
    %20 = arith.mulf %17, %19 : vector<8x256xf32>
    %c0_15 = arith.constant 0 : index
    %c0_16 = arith.constant 0 : index
    %21 = vector.load %arg13[%c0_15, %c0_16] : memref<72x256xf32, #tpu.memory_space<vmem>>, vector<8x256xf32>
    tpu.vector_store %arg13[%c0_15, %c0_16], %20 {strides = array<i32>} : memref<72x256xf32, #tpu.memory_space<vmem>>, vector<8x256xf32>,
    %c0_17 = arith.constant 0 : index
    %c112 = arith.constant 112 : index
    %22 = vector.load %arg12[%c0_17, %c112] : memref<8x512xf32, #tpu.memory_space<vmem>>, vector<8x256xf32>
    %c8 = arith.constant 8 : index
    %c0_18 = arith.constant 0 : index
    %23 = vector.load %arg13[%c8, %c0_18] : memref<72x256xf32, #tpu.memory_space<vmem>>, vector<8x256xf32>
    tpu.vector_store %arg13[%c8, %c0_18], %22 {strides = array<i32>} : memref<72x256xf32, #tpu.memory_space<vmem>>, vector<8x256xf32>,
    %c0_19 = arith.constant 0 : index
    %c113 = arith.constant 113 : index
    %24 = vector.load %arg12[%c0_19, %c113] : memref<8x512xf32, #tpu.memory_space<vmem>>, vector<8x256xf32>
    %c2 = arith.constant 2 : index
    %c0_20 = arith.constant 0 : index
    %25 = vector.load %arg8[%c2, %c0_20] : memref<9x256xf32, #tpu.memory_space<vmem>>, vector<1x256xf32>
    %26 = vector.broadcast %25 : vector<1x256xf32> to vector<8x256xf32>
    %27 = arith.mulf %24, %26 : vector<8x256xf32>
    %c16 = arith.constant 16 : index
    %c0_21 = arith.constant 0 : index
    %28 = vector.load %arg13[%c16, %c0_21] : memref<72x256xf32, #tpu.memory_space<vmem>>, vector<8x256xf32>
    tpu.vector_store %arg13[%c16, %c0_21], %27 {strides = array<i32>} : memref<72x256xf32, #tpu.memory_space<vmem>>, vector<8x256xf32>,
    %c0_22 = arith.constant 0 : index
    %c127 = arith.constant 127 : index
    %29 = vector.load %arg12[%c0_22, %c127] : memref<8x512xf32, #tpu.memory_space<vmem>>, vector<8x256xf32>
    %c3 = arith.constant 3 : index
    %c0_23 = arith.constant 0 : index
    %30 = vector.load %arg8[%c3, %c0_23] : memref<9x256xf32, #tpu.memory_space<vmem>>, vector<1x256xf32>
    %31 = vector.broadcast %30 : vector<1x256xf32> to vector<8x256xf32>
    %32 = arith.mulf %29, %31 : vector<8x256xf32>
    %c24 = arith.constant 24 : index
    %c0_24 = arith.constant 0 : index
    %33 = vector.load %arg13[%c24, %c0_24] : memref<72x256xf32, #tpu.memory_space<vmem>>, vector<8x256xf32>
    tpu.vector_store %arg13[%c24, %c0_24], %32 {strides = array<i32>} : memref<72x256xf32, #tpu.memory_space<vmem>>, vector<8x256xf32>,
    %c0_25 = arith.constant 0 : index
    %c128_26 = arith.constant 128 : index
    %34 = vector.load %arg12[%c0_25, %c128_26] : memref<8x512xf32, #tpu.memory_space<vmem>>, vector<8x256xf32>
    %c32 = arith.constant 32 : index
    %c0_27 = arith.constant 0 : index
    %35 = vector.load %arg13[%c32, %c0_27] : memref<72x256xf32, #tpu.memory_space<vmem>>, vector<8x256xf32>
    tpu.vector_store %arg13[%c32, %c0_27], %34 {strides = array<i32>} : memref<72x256xf32, #tpu.memory_space<vmem>>, vector<8x256xf32>,
    %c0_28 = arith.constant 0 : index
    %c129 = arith.constant 129 : index
    %36 = vector.load %arg12[%c0_28, %c129] : memref<8x512xf32, #tpu.memory_space<vmem>>, vector<8x256xf32>
    %c5 = arith.constant 5 : index
    %c0_29 = arith.constant 0 : index
    %37 = vector.load %arg8[%c5, %c0_29] : memref<9x256xf32, #tpu.memory_space<vmem>>, vector<1x256xf32>
    %38 = vector.broadcast %37 : vector<1x256xf32> to vector<8x256xf32>
    %39 = arith.mulf %36, %38 : vector<8x256xf32>
    %c40 = arith.constant 40 : index
    %c0_30 = arith.constant 0 : index
    %40 = vector.load %arg13[%c40, %c0_30] : memref<72x256xf32, #tpu.memory_space<vmem>>, vector<8x256xf32>
    tpu.vector_store %arg13[%c40, %c0_30], %39 {strides = array<i32>} : memref<72x256xf32, #tpu.memory_space<vmem>>, vector<8x256xf32>,
    %c0_31 = arith.constant 0 : index
    %c143 = arith.constant 143 : index
    %41 = vector.load %arg12[%c0_31, %c143] : memref<8x512xf32, #tpu.memory_space<vmem>>, vector<8x256xf32>
    %c6 = arith.constant 6 : index
    %c0_32 = arith.constant 0 : index
    %42 = vector.load %arg8[%c6, %c0_32] : memref<9x256xf32, #tpu.memory_space<vmem>>, vector<1x256xf32>
    %43 = vector.broadcast %42 : vector<1x256xf32> to vector<8x256xf32>
    %44 = arith.mulf %41, %43 : vector<8x256xf32>
    %c48 = arith.constant 48 : index
    %c0_33 = arith.constant 0 : index
    %45 = vector.load %arg13[%c48, %c0_33] : memref<72x256xf32, #tpu.memory_space<vmem>>, vector<8x256xf32>
    tpu.vector_store %arg13[%c48, %c0_33], %44 {strides = array<i32>} : memref<72x256xf32, #tpu.memory_space<vmem>>, vector<8x256xf32>,
    %c0_34 = arith.constant 0 : index
    %c144 = arith.constant 144 : index
    %46 = vector.load %arg12[%c0_34, %c144] : memref<8x512xf32, #tpu.memory_space<vmem>>, vector<8x256xf32>
    %c56 = arith.constant 56 : index
    %c0_35 = arith.constant 0 : index
    %47 = vector.load %arg13[%c56, %c0_35] : memref<72x256xf32, #tpu.memory_space<vmem>>, vector<8x256xf32>
    tpu.vector_store %arg13[%c56, %c0_35], %46 {strides = array<i32>} : memref<72x256xf32, #tpu.memory_space<vmem>>, vector<8x256xf32>,
    %c0_36 = arith.constant 0 : index
    %c145 = arith.constant 145 : index
    %48 = vector.load %arg12[%c0_36, %c145] : memref<8x512xf32, #tpu.memory_space<vmem>>, vector<8x256xf32>
    %c8_37 = arith.constant 8 : index
    %c0_38 = arith.constant 0 : index
    %49 = vector.load %arg8[%c8_37, %c0_38] : memref<9x256xf32, #tpu.memory_space<vmem>>, vector<1x256xf32>
    %50 = vector.broadcast %49 : vector<1x256xf32> to vector<8x256xf32>
    %51 = arith.mulf %48, %50 : vector<8x256xf32>
    %c64 = arith.constant 64 : index
    %c0_39 = arith.constant 0 : index
    %52 = vector.load %arg13[%c64, %c0_39] : memref<72x256xf32, #tpu.memory_space<vmem>>, vector<8x256xf32>
    tpu.vector_store %arg13[%c64, %c0_39], %51 {strides = array<i32>} : memref<72x256xf32, #tpu.memory_space<vmem>>, vector<8x256xf32>,
    %c0_40 = arith.constant 0 : index
    %c0_41 = arith.constant 0 : index
    %53 = vector.load %arg4[%c0_40, %c0_41] : memref<16x72xf32, #tpu.memory_space<vmem>>, vector<16x72xf32>
    %c0_42 = arith.constant 0 : index
    %c0_43 = arith.constant 0 : index
    %54 = vector.load %arg13[%c0_42, %c0_43] : memref<72x256xf32, #tpu.memory_space<vmem>>, vector<72x256xf32>
    %cst_44 = arith.constant dense<0.000000e+00> : vector<16x256xf32>
    %55 = tpu.matmul %53, %54, %cst_44 {dimension_numbers = #tpu.dot_dimension_numbers<[1], [0], [0], [1], [0, 0, 1, 1], [], []>} : vector<16x72xf32>, vector<72x256xf32>, vector<16x256xf32> -> vector<16x256xf32>
    %c0_45 = arith.constant 0 : index
    %c0_46 = arith.constant 0 : index
    %56 = vector.load %arg5[%c0_45, %c0_46] : memref<16x1xf32, #tpu.memory_space<vmem>>, vector<16x1xf32>
    %57 = vector.broadcast %56 : vector<16x1xf32> to vector<16x256xf32>
    %58 = arith.addf %55, %57 : vector<16x256xf32>
    %59 = arith.negf %58 : vector<16x256xf32>
    %60 = math.exp %59 : vector<16x256xf32>
    %cst_47 = arith.constant 1.000000e+00 : f32
    %61 = vector.broadcast %cst_47 : f32 to vector<16x256xf32>
    %62 = arith.addf %61, %60 : vector<16x256xf32>
    %63 = arith.divf %61, %62 : vector<16x256xf32>
    %64 = arith.mulf %58, %63 : vector<16x256xf32>
    %cst_48 = arith.constant dense<0.000000e+00> : vector<16xf32>
    %65 = vector.multi_reduction <add>, %64, %cst_48 [1] : vector<16x256xf32> to vector<16xf32>
    %66 = vector.shape_cast %65 : vector<16xf32> to vector<16x1xf32>
    %cst_49 = arith.constant 2.560000e+02 : f32
    %67 = vector.broadcast %cst_49 : f32 to vector<16x1xf32>
    %68 = arith.divf %66, %67 : vector<16x1xf32>
    %69 = vector.broadcast %68 : vector<16x1xf32> to vector<16x256xf32>
    %70 = arith.mulf %64, %69 : vector<16x256xf32>
    %c0_50 = arith.constant 0 : index
    %c0_51 = arith.constant 0 : index
    %71 = vector.load %arg6[%c0_50, %c0_51] : memref<8x16xf32, #tpu.memory_space<vmem>>, vector<8x16xf32>
    %cst_52 = arith.constant dense<0.000000e+00> : vector<8x256xf32>
    %72 = tpu.matmul %71, %70, %cst_52 {dimension_numbers = #tpu.dot_dimension_numbers<[1], [0], [0], [1], [0, 0, 1, 1], [], []>} : vector<8x16xf32>, vector<16x256xf32>, vector<8x256xf32> -> vector<8x256xf32>
    %cst_53 = arith.constant dense<0.000000e+00> : vector<8xf32>
    %73 = vector.multi_reduction <add>, %72, %cst_53 [1] : vector<8x256xf32> to vector<8xf32>
    %74 = vector.shape_cast %73 : vector<8xf32> to vector<8x1xf32>
    %cst_54 = arith.constant 2.560000e+02 : f32
    %75 = vector.broadcast %cst_54 : f32 to vector<8x1xf32>
    %76 = arith.divf %74, %75 : vector<8x1xf32>
    %77 = vector.broadcast %76 : vector<8x1xf32> to vector<8x256xf32>
    %78 = arith.subf %72, %77 : vector<8x256xf32>
    %79 = arith.mulf %78, %78 : vector<8x256xf32>
    %cst_55 = arith.constant dense<0.000000e+00> : vector<8xf32>
    %80 = vector.multi_reduction <add>, %79, %cst_55 [1] : vector<8x256xf32> to vector<8xf32>
    %81 = vector.shape_cast %80 : vector<8xf32> to vector<8x1xf32>
    %cst_56 = arith.constant 0.00392156886 : f32
    %82 = vector.broadcast %cst_56 : f32 to vector<8x1xf32>
    %83 = arith.mulf %81, %82 : vector<8x1xf32>
    %84 = math.sqrt %83 : vector<8x1xf32>
    %cst_57 = arith.constant 9.99999974E-6 : f32
    %85 = vector.broadcast %cst_57 : f32 to vector<8x1xf32>
    %86 = arith.addf %84, %85 : vector<8x1xf32>
    %cst_58 = arith.constant 1.000000e+00 : f32
    %87 = vector.broadcast %cst_58 : f32 to vector<8x1xf32>
    %88 = arith.divf %87, %86 : vector<8x1xf32>
    %89 = vector.broadcast %88 : vector<8x1xf32> to vector<8x256xf32>
    %90 = arith.mulf %78, %89 : vector<8x256xf32>
    %c0_59 = arith.constant 0 : index
    %c0_60 = arith.constant 0 : index
    %91 = vector.load %arg9[%c0_59, %c0_60] : memref<8x1xf32, #tpu.memory_space<vmem>>, vector<8x1xf32>
    %92 = vector.broadcast %91 : vector<8x1xf32> to vector<8x256xf32>
    %93 = arith.mulf %90, %92 : vector<8x256xf32>
    %c0_61 = arith.constant 0 : index
    %c0_62 = arith.constant 0 : index
    %94 = vector.load %arg10[%c0_61, %c0_62] : memref<8x1xf32, #tpu.memory_space<vmem>>, vector<8x1xf32>
    %95 = vector.broadcast %94 : vector<8x1xf32> to vector<8x256xf32>
    %96 = arith.addf %93, %95 : vector<8x256xf32>
    %97 = arith.negf %96 : vector<8x256xf32>
    %98 = math.exp %97 : vector<8x256xf32>
    %cst_63 = arith.constant 1.000000e+00 : f32
    %99 = vector.broadcast %cst_63 : f32 to vector<8x256xf32>
    %100 = arith.addf %99, %98 : vector<8x256xf32>
    %101 = arith.divf %99, %100 : vector<8x256xf32>
    %c0_64 = arith.constant 0 : index
    %c0_65 = arith.constant 0 : index
    %102 = vector.load %arg7[%c0_64, %c0_65] : memref<16x8xf32, #tpu.memory_space<vmem>>, vector<16x8xf32>
    %cst_66 = arith.constant dense<0.000000e+00> : vector<16x256xf32>
    %103 = tpu.matmul %102, %101, %cst_66 {dimension_numbers = #tpu.dot_dimension_numbers<[1], [0], [0], [1], [0, 0, 1, 1], [], []>} : vector<16x8xf32>, vector<8x256xf32>, vector<16x256xf32> -> vector<16x256xf32>
    %104 = arith.mulf %64, %103 : vector<16x256xf32>
    %105 = arith.addf %104, %1 : vector<16x256xf32>
    %c0_67 = arith.constant 0 : index
    %c0_68 = arith.constant 0 : index
    %c0_69 = arith.constant 0 : index
    %106 = vector.load %arg11[%c0_67, %c0_68, %c0_69] : memref<1x16x256xf32, #tpu.memory_space<vmem>>, vector<1x16x256xf32>
    %107 = vector.shape_cast %106 : vector<1x16x256xf32> to vector<16x256xf32>
    %108 = vector.shape_cast %105 : vector<16x256xf32> to vector<1x16x256xf32>
    tpu.vector_store %arg11[%c0_67, %c0_68, %c0_69], %108 {strides = array<i32>} : memref<1x16x256xf32, #tpu.memory_space<vmem>>, vector<1x16x256xf32>,
    return
  }
  func.func @transform_0(%arg0: i32) -> (i32, i32, i32) {
    %c0_i32 = arith.constant 0 : i32
    %c0_i32_0 = arith.constant 0 : i32
    %c0_i32_1 = arith.constant 0 : i32
    return %arg0, %c0_i32, %c0_i32_0 : i32, i32, i32
  }
  func.func @transform_1(%arg0: i32) -> (i32, i32) {
    %c0_i32 = arith.constant 0 : i32
    %c0_i32_0 = arith.constant 0 : i32
    %c0_i32_1 = arith.constant 0 : i32
    return %c0_i32, %c0_i32_0 : i32, i32
  }
  func.func @transform_2(%arg0: i32) -> (i32, i32) {
    %c0_i32 = arith.constant 0 : i32
    %c0_i32_0 = arith.constant 0 : i32
    %c0_i32_1 = arith.constant 0 : i32
    return %c0_i32, %c0_i32_0 : i32, i32
  }
  func.func @transform_3(%arg0: i32) -> (i32, i32) {
    %c0_i32 = arith.constant 0 : i32
    %c0_i32_0 = arith.constant 0 : i32
    %c0_i32_1 = arith.constant 0 : i32
    return %c0_i32, %c0_i32_0 : i32, i32
  }
  func.func @transform_4(%arg0: i32) -> (i32, i32) {
    %c0_i32 = arith.constant 0 : i32
    %c0_i32_0 = arith.constant 0 : i32
    %c0_i32_1 = arith.constant 0 : i32
    return %c0_i32, %c0_i32_0 : i32, i32
  }
  func.func @transform_5(%arg0: i32) -> (i32, i32) {
    %c0_i32 = arith.constant 0 : i32
    %c0_i32_0 = arith.constant 0 : i32
    %c0_i32_1 = arith.constant 0 : i32
    return %c0_i32, %c0_i32_0 : i32, i32
  }
  func.func @transform_6(%arg0: i32) -> (i32, i32) {
    %c0_i32 = arith.constant 0 : i32
    %c0_i32_0 = arith.constant 0 : i32
    %c0_i32_1 = arith.constant 0 : i32
    return %c0_i32, %c0_i32_0 : i32, i32
  }
  func.func @transform_7(%arg0: i32) -> (i32, i32) {
    %c0_i32 = arith.constant 0 : i32
    %c0_i32_0 = arith.constant 0 : i32
    %c0_i32_1 = arith.constant 0 : i32
    return %c0_i32, %c0_i32_0 : i32, i32
  }
  func.func @transform_8(%arg0: i32) -> (i32, i32) {
    %c0_i32 = arith.constant 0 : i32
    %c0_i32_0 = arith.constant 0 : i32
    %c0_i32_1 = arith.constant 0 : i32
    return %c0_i32, %c0_i32_0 : i32, i32
  }
  func.func @transform_9(%arg0: i32) -> (i32, i32) {
    %c0_i32 = arith.constant 0 : i32
    %c0_i32_0 = arith.constant 0 : i32
    %c0_i32_1 = arith.constant 0 : i32
    return %c0_i32, %c0_i32_0 : i32, i32
  }
  func.func @transform_10(%arg0: i32) -> (i32, i32, i32) {
    %c0_i32 = arith.constant 0 : i32
    %c0_i32_0 = arith.constant 0 : i32
    %c0_i32_1 = arith.constant 0 : i32
    return %arg0, %c0_i32, %c0_i32_0 : i32, i32, i32
  }
}

</mosaic_0001>

<llo_original>
// kernel: tpu_custom_call.1
$region0: #{tpu_custom_call.1}
  #allocation0 [shape = 'u32[]', space=smem, size = 0x4, offset = 0x4, fixed_abs, tag = 'smem constant byte address 0x4 - core index']
  #allocation1 [shape = 'u32[144,128]{1,0:T(1,128)}', space=vmem, size = 0x12000, scoped, tag = 'internal scratch']
  #allocation2 [shape = 'f32[8,512]{1,0:T(8,128)}', space=vmem, size = 0x4000, scoped, tag = 'scratch operand']
  #allocation3 [shape = 'f32[72,256]{1,0:T(8,128)}', space=vmem, size = 0x12000, scoped, tag = 'scratch operand']
  %s0 = inlined_call_operand.vmem [shape: f32[2,16,256], index: 0, kind: input, shape index: {}]
  %s1 = inlined_call_operand.hbm [shape: f32[8,16], index: 1, kind: input, shape index: {}]
  %s2 = inlined_call_operand.vmem [shape: f32[8,1], index: 2, kind: input, shape index: {}]
  %s3 = inlined_call_operand.hbm [shape: f32[16,72], index: 3, kind: input, shape index: {}]
  %s4 = inlined_call_operand.vmem [shape: f32[16,1], index: 4, kind: input, shape index: {}]
  %s5 = inlined_call_operand.vmem [shape: f32[8,16], index: 5, kind: input, shape index: {}]
  %s6 = inlined_call_operand.vmem [shape: f32[16,8], index: 6, kind: input, shape index: {}]
  %s7 = inlined_call_operand.hbm [shape: f32[9,256], index: 7, kind: input, shape index: {}]
  %s8 = inlined_call_operand.vmem [shape: f32[8,1], index: 8, kind: input, shape index: {}]
  %s9 = inlined_call_operand.vmem [shape: f32[8,1], index: 9, kind: input, shape index: {}]
  %s10 = inlined_call_operand.hbm [shape: f32[2,16,256], index: 10, kind: output, shape index: {}]
  %s11 = sld [smem:[#allocation0]]
  $region85: #{tpu_custom_call.1} parent=0
    _
  %s13 = ssub.s32 1, %s11
  %s14 = scalar_select 0, %s13, %s11
  $region1: #{tpu_custom_call.1} parent=0
    #allocation4 [shape = 'u8[4096]{0}', space=vmem, size = 0x1000, scoped, tag = 'input window, operand 1, single buffered']
    #allocation5 [shape = 's32[2]{0}', space=sflag, size = 0x8, scoped, tag = 'scoped memory for tpu_custom_call.1']
    #allocation6 [shape = 's32[2]{0}', space=sflag, size = 0x8, scoped, tag = 'scoped memory for tpu_custom_call.1']
    #allocation7 [shape = 'u8[8192]{0}', space=vmem, size = 0x2000, scoped, tag = 'input window, operand 3, single buffered']
    #allocation8 [shape = 's32[1]{0}', space=sflag, size = 0x4, scoped, tag = 'scoped memory for tpu_custom_call.1']
    #allocation9 [shape = 'u8[16384]{0}', space=vmem, size = 0x4000, scoped, tag = 'input window, operand 7, single buffered']
    #allocation10 [shape = 'u8[32768]{0}', space=vmem, size = 0x8000, scoped, tag = 'output window, operand 0']
    %15 = vsyncpa [#allocation5], 0
    %16 = vsyncpa [#allocation8], 0
    %17 = vsyncpa [#allocation6], 0
    %s18 = scalar_lea.sflag [#allocation6], 1
    %19 = vsyncpa %s18, 0
    loop: start=0, step=1, limit=4
    $region2: #{tpu_custom_call.1} parent=1 // loop_pre_header
      _
    $region3: #{tpu_custom_call.1} parent=1 // loop_header
      %s21 = sphi 0, %s25
      %p22 = scmp.ge.s32.totalorder %s21, 4
      %s31 = sphi 0, %s33
      %s34 = sphi 0, %s31
      %s35 = sphi 0, %s34
      %s51 = sphi 0, %s35
      %s55 = sphi 0, %s55
      %s57 = sphi 0, %s55
      %s58 = sphi 0, %s57
      %s72 = sphi 0, %s58
      %s76 = sphi 0, %s76
      %s78 = sphi 0, %s76
      %s79 = sphi 0, %s78
      %s93 = sphi 0, %s79
      %s97 = sphi 0, %s97
      %s99 = sphi 0, %s97
      %s100 = sphi 0, %s99
      %s114 = sphi 0, %s100
      %s118 = sphi 0, %s118
      %s120 = sphi 0, %s118
      %s121 = sphi 0, %s120
      %s135 = sphi 0, %s121
      %s139 = sphi 0, %s139
      %s141 = sphi 0, %s139
      %s142 = sphi 0, %s141
      %s156 = sphi 0, %s142
      %s160 = sphi 0, %s160
      %s162 = sphi 0, %s160
      %s163 = sphi 0, %s162
      %s177 = sphi 0, %s163
      %s181 = sphi 0, %s181
      %s183 = sphi 0, %s181
      %s184 = sphi 0, %s183
      %s198 = sphi 0, %s184
      %s202 = sphi 0, %s202
      %s204 = sphi 0, %s202
      %s205 = sphi 0, %s204
      %s219 = sphi 0, %s205
      %s223 = sphi 0, %s223
      %s225 = sphi 0, %s223
      %s226 = sphi 0, %s225
      %s240 = sphi 0, %s226
      %s246 = sphi 0, %s248
      %s249 = sphi 0, %s246
      %s250 = sphi 0, %s249
      %s266 = sphi 0, %s250
    $region4: #{tpu_custom_call.1} parent=1 // loop_header_branch
      %24 = sbr.rel (%p22) target = $region8
    $region5: #{tpu_custom_call.1} parent=1 // loop_body
      %s26 = ssub.s32 %s21, 1
      %s27 = ssub.s32 %s21, 2
      %s28 = sadd.s32 %s21, 1
      %s29 = ssub.s32 %s21, %s28
      %p30 = scmp.eq.s32.totalorder %s29, 0
      %s32 = sadd.s32 %s31, 1
      %s33 = scalar_select %p30, %s31, %s32
      %p36 = pneg %p30
      %p37 = scmp.eq.s32.totalorder %s21, 1
      %p38 = por %p36, %p37
      %p39 = scmp.ne.s32.totalorder %s31, %s34
      %p40 = scmp.eq.s32.totalorder %s21, 0
      %p41 = por %p39, %p40
      %p42 = scmp.ne.s32.totalorder %s31, %s34
      %p43 = scmp.eq.s32.totalorder %s26, 1
      %p44 = por %p42, %p43
      %p45 = scmp.ne.s32.totalorder %s34, %s35
      %p46 = scmp.eq.s32.totalorder %s26, 0
      %p47 = por %p45, %p46
      %p48 = scmp.ne.s32.totalorder %s34, %s35
      %p49 = scmp.eq.s32.totalorder %s27, 1
      %p50 = por %p48, %p49
      %p52 = scmp.ne.s32.totalorder %s35, %s51
      %p53 = scmp.eq.s32.totalorder %s27, 0
      %p54 = por %p52, %p53
      %s56 = sadd.s32 %s55, 1
      %p59 = scmp.eq.s32.totalorder %s21, 1
      %p60 = scmp.ne.s32.totalorder %s55, %s57
      %p61 = scmp.eq.s32.totalorder %s21, 0
      %p62 = por %p60, %p61
      %p63 = scmp.ne.s32.totalorder %s55, %s57
      %p64 = scmp.eq.s32.totalorder %s26, 1
      %p65 = por %p63, %p64
      %p66 = scmp.ne.s32.totalorder %s57, %s58
      %p67 = scmp.eq.s32.totalorder %s26, 0
      %p68 = por %p66, %p67
      %p69 = scmp.ne.s32.totalorder %s57, %s58
      %p70 = scmp.eq.s32.totalorder %s27, 1
      %p71 = por %p69, %p70
      %p73 = scmp.ne.s32.totalorder %s58, %s72
      %p74 = scmp.eq.s32.totalorder %s27, 0
      %p75 = por %p73, %p74
      %s77 = sadd.s32 %s76, 1
      %p80 = scmp.eq.s32.totalorder %s21, 1
      %p81 = scmp.ne.s32.totalorder %s76, %s78
      %p82 = scmp.eq.s32.totalorder %s21, 0
      %p83 = por %p81, %p82
      %p84 = scmp.ne.s32.totalorder %s76, %s78
      %p85 = scmp.eq.s32.totalorder %s26, 1
      %p86 = por %p84, %p85
      %p87 = scmp.ne.s32.totalorder %s78, %s79
      %p88 = scmp.eq.s32.totalorder %s26, 0
      %p89 = por %p87, %p88
      %p90 = scmp.ne.s32.totalorder %s78, %s79
      %p91 = scmp.eq.s32.totalorder %s27, 1
      %p92 = por %p90, %p91
      %p94 = scmp.ne.s32.totalorder %s79, %s93
      %p95 = scmp.eq.s32.totalorder %s27, 0
      %p96 = por %p94, %p95
      %s98 = sadd.s32 %s97, 1
      %p101 = scmp.eq.s32.totalorder %s21, 1
      %p102 = scmp.ne.s32.totalorder %s97, %s99
      %p103 = scmp.eq.s32.totalorder %s21, 0
      %p104 = por %p102, %p103
      %p105 = scmp.ne.s32.totalorder %s97, %s99
      %p106 = scmp.eq.s32.totalorder %s26, 1
      %p107 = por %p105, %p106
      %p108 = scmp.ne.s32.totalorder %s99, %s100
      %p109 = scmp.eq.s32.totalorder %s26, 0
      %p110 = por %p108, %p109
      %p111 = scmp.ne.s32.totalorder %s99, %s100
      %p112 = scmp.eq.s32.totalorder %s27, 1
      %p113 = por %p111, %p112
      %p115 = scmp.ne.s32.totalorder %s100, %s114
      %p116 = scmp.eq.s32.totalorder %s27, 0
      %p117 = por %p115, %p116
      %s119 = sadd.s32 %s118, 1
      %p122 = scmp.eq.s32.totalorder %s21, 1
      %p123 = scmp.ne.s32.totalorder %s118, %s120
      %p124 = scmp.eq.s32.totalorder %s21, 0
      %p125 = por %p123, %p124
      %p126 = scmp.ne.s32.totalorder %s118, %s120
      %p127 = scmp.eq.s32.totalorder %s26, 1
      %p128 = por %p126, %p127
      %p129 = scmp.ne.s32.totalorder %s120, %s121
      %p130 = scmp.eq.s32.totalorder %s26, 0
      %p131 = por %p129, %p130
      %p132 = scmp.ne.s32.totalorder %s120, %s121
      %p133 = scmp.eq.s32.totalorder %s27, 1
      %p134 = por %p132, %p133
      %p136 = scmp.ne.s32.totalorder %s121, %s135
      %p137 = scmp.eq.s32.totalorder %s27, 0
      %p138 = por %p136, %p137
      %s140 = sadd.s32 %s139, 1
      %p143 = scmp.eq.s32.totalorder %s21, 1
      %p144 = scmp.ne.s32.totalorder %s139, %s141
      %p145 = scmp.eq.s32.totalorder %s21, 0
      %p146 = por %p144, %p145
      %p147 = scmp.ne.s32.totalorder %s139, %s141
      %p148 = scmp.eq.s32.totalorder %s26, 1
      %p149 = por %p147, %p148
      %p150 = scmp.ne.s32.totalorder %s141, %s142
      %p151 = scmp.eq.s32.totalorder %s26, 0
      %p152 = por %p150, %p151
      %p153 = scmp.ne.s32.totalorder %s141, %s142
      %p154 = scmp.eq.s32.totalorder %s27, 1
      %p155 = por %p153, %p154
      %p157 = scmp.ne.s32.totalorder %s142, %s156
      %p158 = scmp.eq.s32.totalorder %s27, 0
      %p159 = por %p157, %p158
      %s161 = sadd.s32 %s160, 1
      %p164 = scmp.eq.s32.totalorder %s21, 1
      %p165 = scmp.ne.s32.totalorder %s160, %s162
      %p166 = scmp.eq.s32.totalorder %s21, 0
      %p167 = por %p165, %p166
      %p168 = scmp.ne.s32.totalorder %s160, %s162
      %p169 = scmp.eq.s32.totalorder %s26, 1
      %p170 = por %p168, %p169
      %p171 = scmp.ne.s32.totalorder %s162, %s163
      %p172 = scmp.eq.s32.totalorder %s26, 0
      %p173 = por %p171, %p172
      %p174 = scmp.ne.s32.totalorder %s162, %s163
      %p175 = scmp.eq.s32.totalorder %s27, 1
      %p176 = por %p174, %p175
      %p178 = scmp.ne.s32.totalorder %s163, %s177
      %p179 = scmp.eq.s32.totalorder %s27, 0
      %p180 = por %p178, %p179
      %s182 = sadd.s32 %s181, 1
      %p185 = scmp.eq.s32.totalorder %s21, 1
      %p186 = scmp.ne.s32.totalorder %s181, %s183
      %p187 = scmp.eq.s32.totalorder %s21, 0
      %p188 = por %p186, %p187
      %p189 = scmp.ne.s32.totalorder %s181, %s183
      %p190 = scmp.eq.s32.totalorder %s26, 1
      %p191 = por %p189, %p190
      %p192 = scmp.ne.s32.totalorder %s183, %s184
      %p193 = scmp.eq.s32.totalorder %s26, 0
      %p194 = por %p192, %p193
      %p195 = scmp.ne.s32.totalorder %s183, %s184
      %p196 = scmp.eq.s32.totalorder %s27, 1
      %p197 = por %p195, %p196
      %p199 = scmp.ne.s32.totalorder %s184, %s198
      %p200 = scmp.eq.s32.totalorder %s27, 0
      %p201 = por %p199, %p200
      %s203 = sadd.s32 %s202, 1
      %p206 = scmp.eq.s32.totalorder %s21, 1
      %p207 = scmp.ne.s32.totalorder %s202, %s204
      %p208 = scmp.eq.s32.totalorder %s21, 0
      %p209 = por %p207, %p208
      %p210 = scmp.ne.s32.totalorder %s202, %s204
      %p211 = scmp.eq.s32.totalorder %s26, 1
      %p212 = por %p210, %p211
      %p213 = scmp.ne.s32.totalorder %s204, %s205
      %p214 = scmp.eq.s32.totalorder %s26, 0
      %p215 = por %p213, %p214
      %p216 = scmp.ne.s32.totalorder %s204, %s205
      %p217 = scmp.eq.s32.totalorder %s27, 1
      %p218 = por %p216, %p217
      %p220 = scmp.ne.s32.totalorder %s205, %s219
      %p221 = scmp.eq.s32.totalorder %s27, 0
      %p222 = por %p220, %p221
      %s224 = sadd.s32 %s223, 1
      %p227 = scmp.eq.s32.totalorder %s21, 1
      %p228 = scmp.ne.s32.totalorder %s223, %s225
      %p229 = scmp.eq.s32.totalorder %s21, 0
      %p230 = por %p228, %p229
      %p231 = scmp.ne.s32.totalorder %s223, %s225
      %p232 = scmp.eq.s32.totalorder %s26, 1
      %p233 = por %p231, %p232
      %p234 = scmp.ne.s32.totalorder %s225, %s226
      %p235 = scmp.eq.s32.totalorder %s26, 0
      %p236 = por %p234, %p235
      %p237 = scmp.ne.s32.totalorder %s225, %s226
      %p238 = scmp.eq.s32.totalorder %s27, 1
      %p239 = por %p237, %p238
      %p241 = scmp.ne.s32.totalorder %s226, %s240
      %p242 = scmp.eq.s32.totalorder %s27, 0
      %p243 = por %p241, %p242
      %s244 = ssub.s32 %s21, %s28
      %p245 = scmp.eq.s32.totalorder %s244, 0
      %s247 = sadd.s32 %s246, 1
      %s248 = scalar_select %p245, %s246, %s247
      %p251 = pneg %p245
      %p252 = scmp.eq.s32.totalorder %s21, 1
      %p253 = por %p251, %p252
      %p254 = scmp.ne.s32.totalorder %s246, %s249
      %p255 = scmp.eq.s32.totalorder %s21, 0
      %p256 = por %p254, %p255
      %p257 = scmp.ne.s32.totalorder %s246, %s249
      %p258 = scmp.eq.s32.totalorder %s26, 1
      %p259 = por %p257, %p258
      %p260 = scmp.ne.s32.totalorder %s249, %s250
      %p261 = scmp.eq.s32.totalorder %s26, 0
      %p262 = por %p260, %p261
      %p263 = scmp.ne.s32.totalorder %s249, %s250
      %p264 = scmp.eq.s32.totalorder %s27, 1
      %p265 = por %p263, %p264
      %p267 = scmp.ne.s32.totalorder %s250, %s266
      %p268 = scmp.eq.s32.totalorder %s27, 0
      %p269 = por %p267, %p268
      %p270 = scmp.le.s32.totalorder 1, %s21
      %p271 = scmp.lt.s32.totalorder %s21, 3
      %p272 = pnand %p270, %p271
      %p273 = pneg %p272
      // Predicated region
      $region9: #{tpu_custom_call.1} parent=5 // pred_check
        _
      $region10: #{tpu_custom_call.1} parent=5 // pred_check_branch
        %275 = sbr.rel (%p272) target = $region12
      $region11: #{tpu_custom_call.1} parent=5 // pred_region
        %s276 = ssub.s32 %s21, 1
        // Predicated region
        $region13: #{tpu_custom_call.1} parent=11 // pred_check
          %p277 = pneg %p68
        $region14: #{tpu_custom_call.1} parent=11 // pred_check_branch
          %279 = sbr.rel (%p277) target = $region16
        $region15: #{tpu_custom_call.1} parent=11 // pred_region
          %s281 = ssub.s32 128, 128
          %282 = vsyncadd [#allocation5], %s281
          %s284 = sshll.u32 [#allocation4], 4
          %s285 = int_to_ptr.vmem [resolvable:$true] %s284
          %287 = dma.hbm_to_vmem [thread:$0]  %s1, 128, %s285, [#allocation5]
        $region16: #{tpu_custom_call.1} parent=11 // pred_fallthru
          _
        // Predicated region
        $region17: #{tpu_custom_call.1} parent=11 // pred_check
          %p288 = pneg %p89
        $region18: #{tpu_custom_call.1} parent=11 // pred_check_branch
          %290 = sbr.rel (%p288) target = $region20
        $region19: #{tpu_custom_call.1} parent=11 // pred_region
          _
        $region20: #{tpu_custom_call.1} parent=11 // pred_fallthru
          _
        // Predicated region
        $region21: #{tpu_custom_call.1} parent=11 // pred_check
          %p291 = pneg %p110
        $region22: #{tpu_custom_call.1} parent=11 // pred_check_branch
          %293 = sbr.rel (%p291) target = $region24
        $region23: #{tpu_custom_call.1} parent=11 // pred_region
          %s295 = ssub.s32 256, 256
          %296 = vsyncadd [#allocation8], %s295
          %s297 = sshll.u32 [#allocation7], 4
          %s298 = int_to_ptr.vmem [resolvable:$true] %s297
          %303 = dma.hbm_to_vmem [thread:$0]  %s3, 256, %s298, [#allocation8], 128, 128, 8
        $region24: #{tpu_custom_call.1} parent=11 // pred_fallthru
          _
        // Predicated region
        $region25: #{tpu_custom_call.1} parent=11 // pred_check
          %p304 = pneg %p131
        $region26: #{tpu_custom_call.1} parent=11 // pred_check_branch
          %306 = sbr.rel (%p304) target = $region28
        $region27: #{tpu_custom_call.1} parent=11 // pred_region
          _
        $region28: #{tpu_custom_call.1} parent=11 // pred_fallthru
          _
        // Predicated region
        $region29: #{tpu_custom_call.1} parent=11 // pred_check
          %p307 = pneg %p152
        $region30: #{tpu_custom_call.1} parent=11 // pred_check_branch
          %309 = sbr.rel (%p307) target = $region32
        $region31: #{tpu_custom_call.1} parent=11 // pred_region
          _
        $region32: #{tpu_custom_call.1} parent=11 // pred_fallthru
          _
        // Predicated region
        $region33: #{tpu_custom_call.1} parent=11 // pred_check
          %p310 = pneg %p173
        $region34: #{tpu_custom_call.1} parent=11 // pred_check_branch
          %312 = sbr.rel (%p310) target = $region36
        $region35: #{tpu_custom_call.1} parent=11 // pred_region
          _
        $region36: #{tpu_custom_call.1} parent=11 // pred_fallthru
          _
        // Predicated region
        $region37: #{tpu_custom_call.1} parent=11 // pred_check
          %p313 = pneg %p194
        $region38: #{tpu_custom_call.1} parent=11 // pred_check_branch
          %315 = sbr.rel (%p313) target = $region40
        $region39: #{tpu_custom_call.1} parent=11 // pred_region
          %s317 = ssub.s32 512, 512
          %318 = vsyncadd [#allocation8], %s317
          %s319 = sshll.u32 [#allocation9], 4
          %s320 = int_to_ptr.vmem [resolvable:$true] %s319
          %325 = dma.hbm_to_vmem [thread:$0]  %s7, 512, %s320, [#allocation8], 256, 256, 16
        $region40: #{tpu_custom_call.1} parent=11 // pred_fallthru
          _
        // Predicated region
        $region41: #{tpu_custom_call.1} parent=11 // pred_check
          %p326 = pneg %p215
        $region42: #{tpu_custom_call.1} parent=11 // pred_check_branch
          %328 = sbr.rel (%p326) target = $region44
        $region43: #{tpu_custom_call.1} parent=11 // pred_region
          _
        $region44: #{tpu_custom_call.1} parent=11 // pred_fallthru
          _
        // Predicated region
        $region45: #{tpu_custom_call.1} parent=11 // pred_check
          %p329 = pneg %p236
        $region46: #{tpu_custom_call.1} parent=11 // pred_check_branch
          %331 = sbr.rel (%p329) target = $region48
        $region47: #{tpu_custom_call.1} parent=11 // pred_region
          _
        $region48: #{tpu_custom_call.1} parent=11 // pred_fallthru
          _
      $region12: #{tpu_custom_call.1} parent=5 // pred_fallthru
        _
      %p332 = scmp.lt.s32.totalorder %s21, 2
      // Predicated region
      $region49: #{tpu_custom_call.1} parent=5 // pred_check
        %p333 = pneg %p332
      $region50: #{tpu_custom_call.1} parent=5 // pred_check_branch
        %335 = sbr.rel (%p333) target = $region52
      $region51: #{tpu_custom_call.1} parent=5 // pred_region
        // Predicated region
        $region53: #{tpu_custom_call.1} parent=51 // pred_check
          %p336 = pneg %p41
        $region54: #{tpu_custom_call.1} parent=51 // pred_check_branch
          %338 = sbr.rel (%p336) target = $region56
        $region55: #{tpu_custom_call.1} parent=51 // pred_region
          %p339 = scmp.lt.s32.totalorder %s21, 1
          %s340 = scalar_select %p339, %s21, 1
          %s341 = smul.addr %s340, 4
          %s342 = smul.addr %s341, 8
          %s343 = scalar_lea.vmem %s0, %s342
        $region56: #{tpu_custom_call.1} parent=51 // pred_fallthru
          _
      $region52: #{tpu_custom_call.1} parent=5 // pred_fallthru
        _
      %p344 = scmp.le.s32.totalorder 1, %s21
      %p345 = scmp.lt.s32.totalorder %s21, 3
      %p346 = pnand %p344, %p345
      %p347 = pneg %p346
      // Predicated region
      $region57: #{tpu_custom_call.1} parent=5 // pred_check
        _
      $region58: #{tpu_custom_call.1} parent=5 // pred_check_branch
        %349 = sbr.rel (%p346) target = $region60
      $region59: #{tpu_custom_call.1} parent=5 // pred_region
        %s350 = ssub.s32 %s21, 1
        // Predicated region
        $region61: #{tpu_custom_call.1} parent=59 // pred_check
          %p351 = pneg %p68
        $region62: #{tpu_custom_call.1} parent=59 // pred_check_branch
          %353 = sbr.rel (%p351) target = $region64
        $region63: #{tpu_custom_call.1} parent=59 // pred_region
          %354 = dma.done [#allocation5], 128
        $region64: #{tpu_custom_call.1} parent=59 // pred_fallthru
          _
        // Predicated region
        $region65: #{tpu_custom_call.1} parent=59 // pred_check
          %p355 = pneg %p110
        $region66: #{tpu_custom_call.1} parent=59 // pred_check_branch
          %357 = sbr.rel (%p355) target = $region68
        $region67: #{tpu_custom_call.1} parent=59 // pred_region
          %358 = dma.done [#allocation8], 256
        $region68: #{tpu_custom_call.1} parent=59 // pred_fallthru
          _
        // Predicated region
        $region69: #{tpu_custom_call.1} parent=59 // pred_check
          %p359 = pneg %p194
        $region70: #{tpu_custom_call.1} parent=59 // pred_check_branch
          %361 = sbr.rel (%p359) target = $region72
        $region71: #{tpu_custom_call.1} parent=59 // pred_region
          %362 = dma.done [#allocation8], 512
        $region72: #{tpu_custom_call.1} parent=59 // pred_fallthru
          _
        %p363 = scmp.lt.s32.totalorder %s26, 1
        %s364 = scalar_select %p363, %s26, 1
        %s365 = smul.addr %s364, 4
        %s366 = smul.addr %s365, 8
        %s367 = scalar_lea.vmem %s0, %s366
        %p368 = pneg %p47
        %p369 = pneg %p44
        %p370 = pneg %p68
        %p371 = pneg %p65
        %p372 = pneg %p89
        %p373 = pneg %p86
        %p374 = pneg %p110
        %p375 = pneg %p107
        %p376 = pneg %p131
        %p377 = pneg %p128
        %p378 = pneg %p152
        %p379 = pneg %p149
        %p380 = pneg %p173
        %p381 = pneg %p170
        %p382 = pneg %p194
        %p383 = pneg %p191
        %p384 = pneg %p215
        %p385 = pneg %p212
        %p386 = pneg %p236
        %p387 = pneg %p233
        %p388 = pneg %p262
        %p389 = pneg %p259
        %s390 = sand.u32 %s249, 1
        %s391 = scalar_lea.sflag [#allocation6], %s390
        %s392 = sand.u32 %s249, 1
        %s393 = smul.addr %s392, 32
        %s394 = scalar_lea.vmem [#allocation10], %s393
        %p395 = scmp.lt.s32.totalorder %s26, 1
        %s396 = scalar_select %p395, %s26, 1
        %s397 = smul.addr %s396, 4
        %s398 = smul.addr %s397, 8
        %s399 = scalar_lea.vmem %s0, %s398
        %v400 = vld [vmem:[%s399] sm:$0xff]
        %v401 = vld [vmem:[%s399 + $0x8] sm:$0xff]
        %v402 = vld [vmem:[%s399 + $0x10] sm:$0xff]
        %v403 = vld [vmem:[%s399 + $0x18] sm:$0xff]
        %v404 = vld [vmem:[#allocation4] sm:$0xff]
        %v405 = vld [vmem:[%s2] sm:$0xff]
        %407 = vset.pattern.permute.xlu0 0
        %408 = vperm.xlu0 %407, %v405
        %v409 = vpop.permute.xlu0 %408
        %vm411 = vcmask 130048
        %v413 = vsel %vm411, %v404, 0
        %415 = vmatprep.subr.mxu0 %v401
        %416 = vmatpush1.msra.mxu0 %v400
        %417 = vmatprep.subr.mxu0 %v403
        %418 = vmatpush1.msra.mxu0 %v402
        %419 = vmatprep.subr.mxu0 0.0
        %420 = vmatpush1.msra.mxu0 0.0
        %421 = vmatprep.subr.mxu0 0.0
        %422 = vmatpush1.msra.mxu0 0.0
        %423 = vmatprep.subr.mxu0 0.0
        %424 = vmatpush1.msra.mxu0 0.0
        %425 = vmatprep.subr.mxu0 0.0
        %426 = vmatpush1.msra.mxu0 0.0
        %427 = vmatprep.subr.mxu0 0.0
        %428 = vmatpush1.msra.mxu0 0.0
        %429 = vmatprep.subr.mxu0 0.0
        %430 = vmatpush1.msra.mxu0 0.0
        %431 = vmatprep.subr.mxu0 0.0
        %432 = vmatpush1.msra.mxu0 0.0
        %433 = vmatprep.subr.mxu0 0.0
        %434 = vmatpush1.msra.mxu0 0.0
        %435 = vmatprep.subr.mxu0 0.0
        %436 = vmatpush1.msra.mxu0 0.0
        %437 = vmatprep.subr.mxu0 0.0
        %438 = vmatpush1.msra.mxu0 0.0
        %439 = vmatprep.subr.mxu0 0.0
        %440 = vmatpush1.msra.mxu0 0.0
        %441 = vmatprep.subr.mxu0 0.0
        %442 = vmatpush1.msra.mxu0 0.0
        %443 = vmatprep.subr.mxu0 0.0
        %444 = vmatpush1.msra.mxu0 0.0
        %445 = vmatprep.subr.mxu0 0.0
        %446 = vmatpush1.msra.mxu0 0.0
        %447 = vmatprep.subr.mxu0 0.0
        %448 = vmatpush1.msra.mxu0 0.0
        %449 = vmatprep.subr.mxu0 0.0
        %450 = vmatpush1.msra.mxu0 0.0
        %451 = vmatprep.subr.mxu0 0.0
        %452 = vmatpush1.msra.mxu0 0.0
        %453 = vmatprep.subr.mxu0 0.0
        %454 = vmatpush1.msra.mxu0 0.0
        %455 = vmatprep.subr.mxu0 0.0
        %456 = vmatpush1.msra.mxu0 0.0
        %457 = vmatprep.subr.mxu0 0.0
        %458 = vmatpush1.msra.mxu0 0.0
        %459 = vmatprep.subr.mxu0 0.0
        %460 = vmatpush1.msra.mxu0 0.0
        %461 = vmatprep.subr.mxu0 0.0
        %462 = vmatpush1.msra.mxu0 0.0
        %463 = vmatprep.subr.mxu0 0.0
        %464 = vmatpush1.msra.mxu0 0.0
        %465 = vmatprep.subr.mxu0 0.0
        %466 = vmatpush1.msra.mxu0 0.0
        %467 = vmatprep.subr.mxu0 0.0
        %468 = vmatpush1.msra.mxu0 0.0
        %469 = vmatprep.subr.mxu0 0.0
        %470 = vmatpush1.msra.mxu0 0.0
        %471 = vmatprep.subr.mxu0 0.0
        %472 = vmatpush1.msra.mxu0 0.0
        %473 = vmatprep.subr.mxu0 0.0
        %474 = vmatpush1.msra.mxu0 0.0
        %475 = vmatprep.subr.mxu0 0.0
        %476 = vmatpush1.msra.mxu0 0.0
        %477 = vmatprep.subr.mxu0 0.0
        %478 = vmatpush1.msra.mxu0 0.0
        %479 = vmatprep.mubr.f32.mxu0 0.0
        %480 = vmatmul.mubr.f32.gmra.mrb[0].mxu0 %v413
        %v481 = vpop.f32.mrb[0].mxu0
        %v482 = vadd.f32 %v409, %v481
        %v483 = vpop.f32.mrb[0].mxu0
        %v484 = vadd.f32 %v409, %v483
        %485 = vdwg.mxu0
        %v486 = vxor.u32 %v482, 2147483648
        %v487 = vxor.u32 %v484, 2147483648
        %v488 = vmul.f32 %v486, 1.442695
        %v489 = vpow.pop %v488
        %v490 = vmul.f32 %v487, 1.442695
        %v491 = vpow.pop %v490
        %v492 = vadd.f32 %v489, 1.0
        %v493 = vadd.f32 %v491, 1.0
        %v494 = vrcp.pop %v492
        %v495 = vmul.f32 1.0, %v494
        %v496 = vrcp.pop %v493
        %v497 = vmul.f32 1.0, %v496
        %v498 = vmul.f32 %v482, %v495
        %v499 = vmul.f32 %v484, %v497
        %500 = vst [vmem:[#allocation2] sm:$0xff] 0.0
        %501 = vst [vmem:[#allocation2 + $0x18] sm:$0xff] 0.0
        %502 = vst [vmem:[#allocation2 + $0x8] sm:$0xff] %v498
        %503 = vst [vmem:[#allocation2 + $0x10] sm:$0xff] %v499
        %v504 = vld [vmem:[#allocation2] sm:$0xff]
        %v505 = vld [vmem:[#allocation2 + $0x8] sm:$0xff]
        %v506 = vld [vmem:[#allocation2 + $0x10] sm:$0xff]
        %v507 = vld [vmem:[#allocation9] ss:$8 sm:$0x3]
        %v509 = vlaneseq
        %v510 = vshrl.u32 %v509, 7
        %v511 = vsub.s32 0, %v510
        %v512 = vrot.slane %v507, %v511
        %v513 = vlaneseq
        %v514 = vshrl.u32 %v513, 7
        %v515 = vsub.s32 1, %v514
        %v516 = vrot.slane %v507, %v515
        %517 = vrot.lane.b32.xlu0 %v512, 111
        %v518 = vpop.permute.xlu0 %517
        %519 = vrot.lane.b32.xlu0 %v516, 111
        %v520 = vpop.permute.xlu0 %519
        %vm521 = vcmask 908288
        %v522 = vsel %vm521, %v518, %v520
        %v526 = vmul.f32 %v504, %v518
        %v527 = vmul.f32 %v505, %v522
        %v528 = vmul.f32 %v506, %v520
        %532 = vrot.lane.b32.xlu0 %v526, 17
        %v533 = vpop.permute.xlu0 %532
        %534 = vrot.lane.b32.xlu0 %v527, 17
        %v535 = vpop.permute.xlu0 %534
        %536 = vrot.lane.b32.xlu0 %v528, 17
        %v537 = vpop.permute.xlu0 %536
        %vm538 = vcmask 138240
        %v539 = vsel %vm538, %v533, %v535
        %v540 = vsel %vm538, %v535, %v537
        %543 = vst [vmem:[#allocation3] sm:$0xff] %v539
        %544 = vst [vmem:[#allocation3 + $0x8] sm:$0xff] %v540
        %v545 = vld [vmem:[#allocation2] sm:$0xff]
        %v546 = vld [vmem:[#allocation2 + $0x8] sm:$0xff]
        %v547 = vld [vmem:[#allocation2 + $0x10] sm:$0xff]
        %551 = vrot.lane.b32.xlu0 %v545, 16
        %v552 = vpop.permute.xlu0 %551
        %553 = vrot.lane.b32.xlu0 %v546, 16
        %v554 = vpop.permute.xlu0 %553
        %555 = vrot.lane.b32.xlu0 %v547, 16
        %v556 = vpop.permute.xlu0 %555
        %v557 = vsel %vm411, %v552, %v554
        %v558 = vsel %vm411, %v554, %v556
        %561 = vst [vmem:[#allocation3 + $0x10] sm:$0xff] %v557
        %562 = vst [vmem:[#allocation3 + $0x18] sm:$0xff] %v558
        %v563 = vld [vmem:[#allocation2] sm:$0xff]
        %v564 = vld [vmem:[#allocation2 + $0x8] sm:$0xff]
        %v565 = vld [vmem:[#allocation2 + $0x10] sm:$0xff]
        %s566 = scalar_lea.vmem [#allocation9], 2
        %v567 = vld [vmem:[%s566] ss:$8 sm:$0x3]
        %v569 = vlaneseq
        %v570 = vshrl.u32 %v569, 7
        %v571 = vsub.s32 0, %v570
        %v572 = vrot.slane %v567, %v571
        %v573 = vlaneseq
        %v574 = vshrl.u32 %v573, 7
        %v575 = vsub.s32 1, %v574
        %v576 = vrot.slane %v567, %v575
        %577 = vrot.lane.b32.xlu0 %v572, 113
        %v578 = vpop.permute.xlu0 %577
        %579 = vrot.lane.b32.xlu0 %v576, 113
        %v580 = vpop.permute.xlu0 %579
        %vm581 = vcmask 924672
        %v582 = vsel %vm581, %v578, %v580
        %v586 = vmul.f32 %v563, %v578
        %v587 = vmul.f32 %v564, %v582
        %v588 = vmul.f32 %v565, %v580
        %592 = vrot.lane.b32.xlu0 %v586, 15
        %v593 = vpop.permute.xlu0 %592
        %594 = vrot.lane.b32.xlu0 %v587, 15
        %v595 = vpop.permute.xlu0 %594
        %596 = vrot.lane.b32.xlu0 %v588, 15
        %v597 = vpop.permute.xlu0 %596
        %vm598 = vcmask 121856
        %v599 = vsel %vm598, %v593, %v595
        %v600 = vsel %vm598, %v595, %v597
        %603 = vst [vmem:[#allocation3 + $0x20] sm:$0xff] %v599
        %604 = vst [vmem:[#allocation3 + $0x28] sm:$0xff] %v600
        %v605 = vld [vmem:[#allocation2] sm:$0xff]
        %v606 = vld [vmem:[#allocation2 + $0x8] sm:$0xff]
        %v607 = vld [vmem:[#allocation2 + $0x10] sm:$0xff]
        %s608 = scalar_lea.vmem [#allocation9], 3
        %v609 = vld [vmem:[%s608] ss:$8 sm:$0x3]
        %v611 = vlaneseq
        %v612 = vshrl.u32 %v611, 7
        %v613 = vsub.s32 0, %v612
        %v614 = vrot.slane %v609, %v613
        %v615 = vlaneseq
        %v616 = vshrl.u32 %v615, 7
        %v617 = vsub.s32 1, %v616
        %v618 = vrot.slane %v609, %v617
        %619 = vrot.lane.b32.xlu0 %v614, 127
        %v620 = vpop.permute.xlu0 %619
        %621 = vrot.lane.b32.xlu0 %v618, 127
        %v622 = vpop.permute.xlu0 %621
        %vm623 = vcmask 1039360
        %v624 = vsel %vm623, %v620, %v622
        %v628 = vmul.f32 %v605, %v620
        %v629 = vmul.f32 %v606, %v624
        %v630 = vmul.f32 %v607, %v622
        %634 = vrot.lane.b32.xlu0 %v628, 1
        %v635 = vpop.permute.xlu0 %634
        %636 = vrot.lane.b32.xlu0 %v629, 1
        %v637 = vpop.permute.xlu0 %636
        %638 = vrot.lane.b32.xlu0 %v630, 1
        %v639 = vpop.permute.xlu0 %638
        %vm640 = vcmask 7168
        %v641 = vsel %vm640, %v635, %v637
        %v642 = vsel %vm640, %v637, %v639
        %645 = vst [vmem:[#allocation3 + $0x30] sm:$0xff] %v641
        %646 = vst [vmem:[#allocation3 + $0x38] sm:$0xff] %v642
        %v647 = vld [vmem:[#allocation2 + $0x8] sm:$0xff]
        %v648 = vld [vmem:[#allocation2 + $0x10] sm:$0xff]
        %649 = vst [vmem:[#allocation3 + $0x40] sm:$0xff] %v647
        %650 = vst [vmem:[#allocation3 + $0x48] sm:$0xff] %v648
        %v651 = vld [vmem:[#allocation2 + $0x8] sm:$0xff]
        %v652 = vld [vmem:[#allocation2 + $0x10] sm:$0xff]
        %v653 = vld [vmem:[#allocation2 + $0x18] sm:$0xff]
        %s654 = scalar_lea.vmem [#allocation9], 5
        %v655 = vld [vmem:[%s654] ss:$8 sm:$0x3]
        %v657 = vlaneseq
        %v658 = vshrl.u32 %v657, 7
        %v659 = vsub.s32 0, %v658
        %v660 = vrot.slane %v655, %v659
        %v661 = vlaneseq
        %v662 = vshrl.u32 %v661, 7
        %v663 = vsub.s32 1, %v662
        %v664 = vrot.slane %v655, %v663
        %665 = vrot.lane.b32.xlu0 %v660, 1
        %v666 = vpop.permute.xlu0 %665
        %667 = vrot.lane.b32.xlu0 %v664, 1
        %v668 = vpop.permute.xlu0 %667
        %v669 = vsel %vm640, %v666, %v668
        %v673 = vmul.f32 %v651, %v666
        %v674 = vmul.f32 %v652, %v669
        %v675 = vmul.f32 %v653, %v668
        %679 = vrot.lane.b32.xlu0 %v673, 127
        %v680 = vpop.permute.xlu0 %679
        %681 = vrot.lane.b32.xlu0 %v674, 127
        %v682 = vpop.permute.xlu0 %681
        %683 = vrot.lane.b32.xlu0 %v675, 127
        %v684 = vpop.permute.xlu0 %683
        %v685 = vsel %vm623, %v680, %v682
        %v686 = vsel %vm623, %v682, %v684
        %689 = vst [vmem:[#allocation3 + $0x50] sm:$0xff] %v685
        %690 = vst [vmem:[#allocation3 + $0x58] sm:$0xff] %v686
        %v691 = vld [vmem:[#allocation2 + $0x8] sm:$0xff]
        %v692 = vld [vmem:[#allocation2 + $0x10] sm:$0xff]
        %v693 = vld [vmem:[#allocation2 + $0x18] sm:$0xff]
        %s694 = scalar_lea.vmem [#allocation9], 6
        %v695 = vld [vmem:[%s694] ss:$8 sm:$0x3]
        %v697 = vlaneseq
        %v698 = vshrl.u32 %v697, 7
        %v699 = vsub.s32 0, %v698
        %v700 = vrot.slane %v695, %v699
        %v701 = vlaneseq
        %v702 = vshrl.u32 %v701, 7
        %v703 = vsub.s32 1, %v702
        %v704 = vrot.slane %v695, %v703
        %705 = vrot.lane.b32.xlu0 %v700, 15
        %v706 = vpop.permute.xlu0 %705
        %707 = vrot.lane.b32.xlu0 %v704, 15
        %v708 = vpop.permute.xlu0 %707
        %v709 = vsel %vm598, %v706, %v708
        %v713 = vmul.f32 %v691, %v706
        %v714 = vmul.f32 %v692, %v709
        %v715 = vmul.f32 %v693, %v708
        %719 = vrot.lane.b32.xlu0 %v713, 113
        %v720 = vpop.permute.xlu0 %719
        %721 = vrot.lane.b32.xlu0 %v714, 113
        %v722 = vpop.permute.xlu0 %721
        %723 = vrot.lane.b32.xlu0 %v715, 113
        %v724 = vpop.permute.xlu0 %723
        %v725 = vsel %vm581, %v720, %v722
        %v726 = vsel %vm581, %v722, %v724
        %729 = vst [vmem:[#allocation3 + $0x60] sm:$0xff] %v725
        %730 = vst [vmem:[#allocation3 + $0x68] sm:$0xff] %v726
        %v731 = vld [vmem:[#allocation2 + $0x8] sm:$0xff]
        %v732 = vld [vmem:[#allocation2 + $0x10] sm:$0xff]
        %v733 = vld [vmem:[#allocation2 + $0x18] sm:$0xff]
        %737 = vrot.lane.b32.xlu0 %v731, 112
        %v738 = vpop.permute.xlu0 %737
        %739 = vrot.lane.b32.xlu0 %v732, 112
        %v740 = vpop.permute.xlu0 %739
        %741 = vrot.lane.b32.xlu0 %v733, 112
        %v742 = vpop.permute.xlu0 %741
        %vm743 = vcmask 916480
        %v744 = vsel %vm743, %v738, %v740
        %v745 = vsel %vm743, %v740, %v742
        %748 = vst [vmem:[#allocation3 + $0x70] sm:$0xff] %v744
        %749 = vst [vmem:[#allocation3 + $0x78] sm:$0xff] %v745
        %v750 = vld [vmem:[#allocation2 + $0x8] sm:$0xff]
        %v751 = vld [vmem:[#allocation2 + $0x10] sm:$0xff]
        %v752 = vld [vmem:[#allocation2 + $0x18] sm:$0xff]
        %s753 = scalar_lea.vmem [#allocation9], 16
        %v754 = vld [vmem:[%s753] ss:$8 sm:$0x3]
        %v756 = vlaneseq
        %v757 = vshrl.u32 %v756, 7
        %v758 = vsub.s32 0, %v757
        %v759 = vrot.slane %v754, %v758
        %v760 = vlaneseq
        %v761 = vshrl.u32 %v760, 7
        %v762 = vsub.s32 1, %v761
        %v763 = vrot.slane %v754, %v762
        %764 = vrot.lane.b32.xlu0 %v759, 17
        %v765 = vpop.permute.xlu0 %764
        %766 = vrot.lane.b32.xlu0 %v763, 17
        %v767 = vpop.permute.xlu0 %766
        %v768 = vsel %vm538, %v765, %v767
        %v772 = vmul.f32 %v750, %v765
        %v773 = vmul.f32 %v751, %v768
        %v774 = vmul.f32 %v752, %v767
        %778 = vrot.lane.b32.xlu0 %v772, 111
        %v779 = vpop.permute.xlu0 %778
        %780 = vrot.lane.b32.xlu0 %v773, 111
        %v781 = vpop.permute.xlu0 %780
        %782 = vrot.lane.b32.xlu0 %v774, 111
        %v783 = vpop.permute.xlu0 %782
        %v784 = vsel %vm521, %v779, %v781
        %v785 = vsel %vm521, %v781, %v783
        %788 = vst [vmem:[#allocation3 + $0x80] sm:$0xff] %v784
        %789 = vst [vmem:[#allocation3 + $0x88] sm:$0xff] %v785
        %v790 = vld [vmem:[#allocation7] sm:$0xff]
        %v791 = vld [vmem:[#allocation7 + $0x8] sm:$0xff]
        %v792 = vld [vmem:[#allocation3] sm:$0xff]
        %v793 = vld [vmem:[#allocation3 + $0x8] sm:$0xff]
        %v794 = vld [vmem:[#allocation3 + $0x10] sm:$0xff]
        %v795 = vld [vmem:[#allocation3 + $0x18] sm:$0xff]
        %v796 = vld [vmem:[#allocation3 + $0x20] sm:$0xff]
        %v797 = vld [vmem:[#allocation3 + $0x28] sm:$0xff]
        %v798 = vld [vmem:[#allocation3 + $0x30] sm:$0xff]
        %v799 = vld [vmem:[#allocation3 + $0x38] sm:$0xff]
        %v800 = vld [vmem:[#allocation3 + $0x40] sm:$0xff]
        %v801 = vld [vmem:[#allocation3 + $0x48] sm:$0xff]
        %v802 = vld [vmem:[#allocation3 + $0x50] sm:$0xff]
        %v803 = vld [vmem:[#allocation3 + $0x58] sm:$0xff]
        %v804 = vld [vmem:[#allocation3 + $0x60] sm:$0xff]
        %v805 = vld [vmem:[#allocation3 + $0x68] sm:$0xff]
        %v806 = vld [vmem:[#allocation3 + $0x70] sm:$0xff]
        %v807 = vld [vmem:[#allocation3 + $0x78] sm:$0xff]
        %v808 = vld [vmem:[#allocation3 + $0x80] sm:$0xff]
        %v809 = vld [vmem:[#allocation3 + $0x88] sm:$0xff]
        %v810 = vld [vmem:[%s4] sm:$0xff]
        %v811 = vld [vmem:[%s4 + $0x8] sm:$0xff]
        %813 = vset.pattern.permute.xlu0 0
        %814 = vperm.xlu0 %813, %v810
        %v815 = vpop.permute.xlu0 %814
        %818 = vset.pattern.permute.xlu0 0
        %819 = vperm.xlu0 %818, %v811
        %v820 = vpop.permute.xlu0 %819
        %vm822 = vcmask 588800
        %v824 = vsel %vm822, %v790, 0
        %v827 = vsel %vm822, %v791, 0
        %829 = vmatprep.subr.mxu0 %v793
        %830 = vmatpush1.msra.mxu0 %v792
        %831 = vmatprep.subr.mxu0 %v795
        %832 = vmatpush1.msra.mxu0 %v794
        %833 = vmatprep.subr.mxu0 %v797
        %834 = vmatpush1.msra.mxu0 %v796
        %835 = vmatprep.subr.mxu0 %v799
        %836 = vmatpush1.msra.mxu0 %v798
        %837 = vmatprep.subr.mxu0 %v801
        %838 = vmatpush1.msra.mxu0 %v800
        %839 = vmatprep.subr.mxu0 %v803
        %840 = vmatpush1.msra.mxu0 %v802
        %841 = vmatprep.subr.mxu0 %v805
        %842 = vmatpush1.msra.mxu0 %v804
        %843 = vmatprep.subr.mxu0 %v807
        %844 = vmatpush1.msra.mxu0 %v806
        %845 = vmatprep.subr.mxu0 %v809
        %846 = vmatpush1.msra.mxu0 %v808
        %847 = vmatprep.subr.mxu0 0.0
        %848 = vmatpush1.msra.mxu0 0.0
        %849 = vmatprep.subr.mxu0 0.0
        %850 = vmatpush1.msra.mxu0 0.0
        %851 = vmatprep.subr.mxu0 0.0
        %852 = vmatpush1.msra.mxu0 0.0
        %853 = vmatprep.subr.mxu0 0.0
        %854 = vmatpush1.msra.mxu0 0.0
        %855 = vmatprep.subr.mxu0 0.0
        %856 = vmatpush1.msra.mxu0 0.0
        %857 = vmatprep.subr.mxu0 0.0
        %858 = vmatpush1.msra.mxu0 0.0
        %859 = vmatprep.subr.mxu0 0.0
        %860 = vmatpush1.msra.mxu0 0.0
        %861 = vmatprep.subr.mxu0 0.0
        %862 = vmatpush1.msra.mxu0 0.0
        %863 = vmatprep.subr.mxu0 0.0
        %864 = vmatpush1.msra.mxu0 0.0
        %865 = vmatprep.subr.mxu0 0.0
        %866 = vmatpush1.msra.mxu0 0.0
        %867 = vmatprep.subr.mxu0 0.0
        %868 = vmatpush1.msra.mxu0 0.0
        %869 = vmatprep.subr.mxu0 0.0
        %870 = vmatpush1.msra.mxu0 0.0
        %871 = vmatprep.subr.mxu0 0.0
        %872 = vmatpush1.msra.mxu0 0.0
        %873 = vmatprep.subr.mxu0 0.0
        %874 = vmatpush1.msra.mxu0 0.0
        %875 = vmatprep.subr.mxu0 0.0
        %876 = vmatpush1.msra.mxu0 0.0
        %877 = vmatprep.subr.mxu0 0.0
        %878 = vmatpush1.msra.mxu0 0.0
        %879 = vmatprep.subr.mxu0 0.0
        %880 = vmatpush1.msra.mxu0 0.0
        %881 = vmatprep.subr.mxu0 0.0
        %882 = vmatpush1.msra.mxu0 0.0
        %883 = vmatprep.subr.mxu0 0.0
        %884 = vmatpush1.msra.mxu0 0.0
        %885 = vmatprep.subr.mxu0 0.0
        %886 = vmatpush1.msra.mxu0 0.0
        %887 = vmatprep.subr.mxu0 0.0
        %888 = vmatpush1.msra.mxu0 0.0
        %889 = vmatprep.subr.mxu0 0.0
        %890 = vmatpush1.msra.mxu0 0.0
        %891 = vmatprep.subr.mxu0 0.0
        %892 = vmatpush1.msra.mxu0 0.0
        %893 = vmatprep.mubr.f32.mxu0 0.0
        %894 = vmatmul.mubr.f32.gmra.mrb[0].mxu0 %v824
        %v895 = vpop.f32.mrb[0].mxu0
        %v896 = vadd.f32 %v815, %v895
        %v897 = vpop.f32.mrb[0].mxu0
        %v898 = vadd.f32 %v815, %v897
        %899 = vmatprep.mubr.f32.mxu0 0.0
        %900 = vmatmul.mubr.f32.gmra.mrb[0].mxu0 %v827
        %v901 = vpop.f32.mrb[0].mxu0
        %v902 = vadd.f32 %v820, %v901
        %v903 = vpop.f32.mrb[0].mxu0
        %v904 = vadd.f32 %v820, %v903
        %905 = vdwg.mxu0
        %v906 = vxor.u32 %v896, 2147483648
        %v907 = vxor.u32 %v898, 2147483648
        %v908 = vxor.u32 %v902, 2147483648
        %v909 = vxor.u32 %v904, 2147483648
        %v910 = vmul.f32 %v906, 1.442695
        %v911 = vpow.pop %v910
        %v912 = vmul.f32 %v907, 1.442695
        %v913 = vpow.pop %v912
        %v914 = vmul.f32 %v908, 1.442695
        %v915 = vpow.pop %v914
        %v916 = vmul.f32 %v909, 1.442695
        %v917 = vpow.pop %v916
        %v918 = vadd.f32 %v911, 1.0
        %v919 = vadd.f32 %v913, 1.0
        %v920 = vadd.f32 %v915, 1.0
        %v921 = vadd.f32 %v917, 1.0
        %v922 = vrcp.pop %v918
        %v923 = vmul.f32 1.0, %v922
        %v924 = vrcp.pop %v919
        %v925 = vmul.f32 1.0, %v924
        %v926 = vrcp.pop %v920
        %v927 = vmul.f32 1.0, %v926
        %v928 = vrcp.pop %v921
        %v929 = vmul.f32 1.0, %v928
        %v930 = vmul.f32 %v896, %v923
        %v931 = vmul.f32 %v898, %v925
        %v932 = vmul.f32 %v902, %v927
        %v933 = vmul.f32 %v904, %v929
        %v934 = vadd.f32 %v930, %v931
        %935 = vadd.xlane.f32.xlu0 %v934
        %v936 = vpop.xlane.xlu0 %935
        %v937 = vadd.f32 %v932, %v933
        %938 = vadd.xlane.f32.xlu0 %v937
        %v939 = vpop.xlane.xlu0 %938
        %v940 = vrcp.pop 256.0
        %v941 = vmul.f32 %v936, %v940
        %v942 = vmul.f32 %v939, %v940
        %v943 = vmul.f32 %v930, %v941
        %v944 = vmul.f32 %v931, %v941
        %v945 = vmul.f32 %v932, %v942
        %v946 = vmul.f32 %v933, %v942
        %v947 = vld [vmem:[%s5] sm:$0xff]
        %v949 = vsel %vm411, %v947, 0
        %951 = vmatprep.subr.mxu0 %v944
        %952 = vmatpush1.msra.mxu0 %v943
        %953 = vmatprep.subr.mxu0 %v946
        %954 = vmatpush1.msra.mxu0 %v945
        %955 = vmatprep.subr.mxu0 0.0
        %956 = vmatpush1.msra.mxu0 0.0
        %957 = vmatprep.subr.mxu0 0.0
        %958 = vmatpush1.msra.mxu0 0.0
        %959 = vmatprep.subr.mxu0 0.0
        %960 = vmatpush1.msra.mxu0 0.0
        %961 = vmatprep.subr.mxu0 0.0
        %962 = vmatpush1.msra.mxu0 0.0
        %963 = vmatprep.subr.mxu0 0.0
        %964 = vmatpush1.msra.mxu0 0.0
        %965 = vmatprep.subr.mxu0 0.0
        %966 = vmatpush1.msra.mxu0 0.0
        %967 = vmatprep.subr.mxu0 0.0
        %968 = vmatpush1.msra.mxu0 0.0
        %969 = vmatprep.subr.mxu0 0.0
        %970 = vmatpush1.msra.mxu0 0.0
        %971 = vmatprep.subr.mxu0 0.0
        %972 = vmatpush1.msra.mxu0 0.0
        %973 = vmatprep.subr.mxu0 0.0
        %974 = vmatpush1.msra.mxu0 0.0
        %975 = vmatprep.subr.mxu0 0.0
        %976 = vmatpush1.msra.mxu0 0.0
        %977 = vmatprep.subr.mxu0 0.0
        %978 = vmatpush1.msra.mxu0 0.0
        %979 = vmatprep.subr.mxu0 0.0
        %980 = vmatpush1.msra.mxu0 0.0
        %981 = vmatprep.subr.mxu0 0.0
        %982 = vmatpush1.msra.mxu0 0.0
        %983 = vmatprep.subr.mxu0 0.0
        %984 = vmatpush1.msra.mxu0 0.0
        %985 = vmatprep.subr.mxu0 0.0
        %986 = vmatpush1.msra.mxu0 0.0
        %987 = vmatprep.subr.mxu0 0.0
        %988 = vmatpush1.msra.mxu0 0.0
        %989 = vmatprep.subr.mxu0 0.0
        %990 = vmatpush1.msra.mxu0 0.0
        %991 = vmatprep.subr.mxu0 0.0
        %992 = vmatpush1.msra.mxu0 0.0
        %993 = vmatprep.subr.mxu0 0.0
        %994 = vmatpush1.msra.mxu0 0.0
        %995 = vmatprep.subr.mxu0 0.0
        %996 = vmatpush1.msra.mxu0 0.0
        %997 = vmatprep.subr.mxu0 0.0
        %998 = vmatpush1.msra.mxu0 0.0
        %999 = vmatprep.subr.mxu0 0.0
        %1000 = vmatpush1.msra.mxu0 0.0
        %1001 = vmatprep.subr.mxu0 0.0
        %1002 = vmatpush1.msra.mxu0 0.0
        %1003 = vmatprep.subr.mxu0 0.0
        %1004 = vmatpush1.msra.mxu0 0.0
        %1005 = vmatprep.subr.mxu0 0.0
        %1006 = vmatpush1.msra.mxu0 0.0
        %1007 = vmatprep.subr.mxu0 0.0
        %1008 = vmatpush1.msra.mxu0 0.0
        %1009 = vmatprep.subr.mxu0 0.0
        %1010 = vmatpush1.msra.mxu0 0.0
        %1011 = vmatprep.subr.mxu0 0.0
        %1012 = vmatpush1.msra.mxu0 0.0
        %1013 = vmatprep.subr.mxu0 0.0
        %1014 = vmatpush1.msra.mxu0 0.0
        %1015 = vmatprep.mubr.f32.mxu0 0.0
        %1016 = vmatmul.mubr.f32.gmra.mrb[0].mxu0 %v949
        %v1017 = vpop.f32.mrb[0].mxu0
        %v1018 = vadd.f32 0.0, %v1017
        %v1019 = vpop.f32.mrb[0].mxu0
        %v1020 = vadd.f32 0.0, %v1019
        %1021 = vdwg.mxu0
        %v1022 = vadd.f32 %v1018, %v1020
        %1023 = vadd.xlane.f32.xlu0 %v1022
        %v1024 = vpop.xlane.xlu0 %1023
        %v1025 = vmul.f32 %v1024, %v940
        %v1026 = vsub.f32 %v1018, %v1025
        %v1027 = vsub.f32 %v1020, %v1025
        %v1028 = vmul.f32 %v1026, %v1026
        %v1029 = vmul.f32 %v1027, %v1027
        %v1030 = vadd.f32 %v1028, %v1029
        %1031 = vadd.xlane.f32.xlu0 %v1030
        %v1032 = vpop.xlane.xlu0 %1031
        %v1033 = vmul.f32 %v1032, 0.003921569
        %v1034 = vrsqrt.pop %v1033
        %v1035 = vmul.f32 %v1033, %v1034
        %vm1036 = vcmp.eq.f32.partialorder %v1033, inf
        %v1037 = vsel %vm1036, %v1033, %v1035
        %vm1038 = vcmp.eq.f32.partialorder %v1033, 0.0
        %v1039 = vand.u32 %v1033, 2147483648
        %v1040 = vsel %vm1038, %v1039, %v1037
        %v1041 = vadd.f32 %v1040, 1e-05
        %v1042 = vrcp.pop %v1041
        %v1043 = vmul.f32 1.0, %v1042
        %v1044 = vmul.f32 %v1026, %v1043
        %v1045 = vmul.f32 %v1027, %v1043
        %v1046 = vld [vmem:[%s8] sm:$0xff]
        %1048 = vset.pattern.permute.xlu0 0
        %1049 = vperm.xlu0 %1048, %v1046
        %v1050 = vpop.permute.xlu0 %1049
        %v1052 = vmul.f32 %v1044, %v1050
        %v1053 = vmul.f32 %v1045, %v1050
        %v1054 = vld [vmem:[%s9] sm:$0xff]
        %1056 = vset.pattern.permute.xlu0 0
        %1057 = vperm.xlu0 %1056, %v1054
        %v1058 = vpop.permute.xlu0 %1057
        %v1060 = vadd.f32 %v1052, %v1058
        %v1061 = vadd.f32 %v1053, %v1058
        %v1062 = vxor.u32 %v1060, 2147483648
        %v1063 = vxor.u32 %v1061, 2147483648
        %v1064 = vmul.f32 %v1062, 1.442695
        %v1065 = vpow.pop %v1064
        %v1066 = vmul.f32 %v1063, 1.442695
        %v1067 = vpow.pop %v1066
        %v1068 = vadd.f32 %v1065, 1.0
        %v1069 = vadd.f32 %v1067, 1.0
        %v1070 = vrcp.pop %v1068
        %v1071 = vmul.f32 1.0, %v1070
        %v1072 = vrcp.pop %v1069
        %v1073 = vmul.f32 1.0, %v1072
        %v1074 = vld [vmem:[%s6] sm:$0xff]
        %v1075 = vld [vmem:[%s6 + $0x8] sm:$0xff]
        %vm1076 = vcmask 64512
        %v1078 = vsel %vm1076, %v1074, 0
        %v1081 = vsel %vm1076, %v1075, 0
        %1083 = vmatprep.subr.mxu0 %v1073
        %1084 = vmatpush1.msra.mxu0 %v1071
        %1085 = vmatprep.subr.mxu0 0.0
        %1086 = vmatpush1.msra.mxu0 0.0
        %1087 = vmatprep.subr.mxu0 0.0
        %1088 = vmatpush1.msra.mxu0 0.0
        %1089 = vmatprep.subr.mxu0 0.0
        %1090 = vmatpush1.msra.mxu0 0.0
        %1091 = vmatprep.subr.mxu0 0.0
        %1092 = vmatpush1.msra.mxu0 0.0
        %1093 = vmatprep.subr.mxu0 0.0
        %1094 = vmatpush1.msra.mxu0 0.0
        %1095 = vmatprep.subr.mxu0 0.0
        %1096 = vmatpush1.msra.mxu0 0.0
        %1097 = vmatprep.subr.mxu0 0.0
        %1098 = vmatpush1.msra.mxu0 0.0
        %1099 = vmatprep.subr.mxu0 0.0
        %1100 = vmatpush1.msra.mxu0 0.0
        %1101 = vmatprep.subr.mxu0 0.0
        %1102 = vmatpush1.msra.mxu0 0.0
        %1103 = vmatprep.subr.mxu0 0.0
        %1104 = vmatpush1.msra.mxu0 0.0
        %1105 = vmatprep.subr.mxu0 0.0
        %1106 = vmatpush1.msra.mxu0 0.0
        %1107 = vmatprep.subr.mxu0 0.0
        %1108 = vmatpush1.msra.mxu0 0.0
        %1109 = vmatprep.subr.mxu0 0.0
        %1110 = vmatpush1.msra.mxu0 0.0
        %1111 = vmatprep.subr.mxu0 0.0
        %1112 = vmatpush1.msra.mxu0 0.0
        %1113 = vmatprep.subr.mxu0 0.0
        %1114 = vmatpush1.msra.mxu0 0.0
        %1115 = vmatprep.subr.mxu0 0.0
        %1116 = vmatpush1.msra.mxu0 0.0
        %1117 = vmatprep.subr.mxu0 0.0
        %1118 = vmatpush1.msra.mxu0 0.0
        %1119 = vmatprep.subr.mxu0 0.0
        %1120 = vmatpush1.msra.mxu0 0.0
        %1121 = vmatprep.subr.mxu0 0.0
        %1122 = vmatpush1.msra.mxu0 0.0
        %1123 = vmatprep.subr.mxu0 0.0
        %1124 = vmatpush1.msra.mxu0 0.0
        %1125 = vmatprep.subr.mxu0 0.0
        %1126 = vmatpush1.msra.mxu0 0.0
        %1127 = vmatprep.subr.mxu0 0.0
        %1128 = vmatpush1.msra.mxu0 0.0
        %1129 = vmatprep.subr.mxu0 0.0
        %1130 = vmatpush1.msra.mxu0 0.0
        %1131 = vmatprep.subr.mxu0 0.0
        %1132 = vmatpush1.msra.mxu0 0.0
        %1133 = vmatprep.subr.mxu0 0.0
        %1134 = vmatpush1.msra.mxu0 0.0
        %1135 = vmatprep.subr.mxu0 0.0
        %1136 = vmatpush1.msra.mxu0 0.0
        %1137 = vmatprep.subr.mxu0 0.0
        %1138 = vmatpush1.msra.mxu0 0.0
        %1139 = vmatprep.subr.mxu0 0.0
        %1140 = vmatpush1.msra.mxu0 0.0
        %1141 = vmatprep.subr.mxu0 0.0
        %1142 = vmatpush1.msra.mxu0 0.0
        %1143 = vmatprep.subr.mxu0 0.0
        %1144 = vmatpush1.msra.mxu0 0.0
        %1145 = vmatprep.subr.mxu0 0.0
        %1146 = vmatpush1.msra.mxu0 0.0
        %1147 = vmatprep.mubr.f32.mxu0 0.0
        %1148 = vmatmul.mubr.f32.gmra.mrb[0].mxu0 %v1078
        %v1149 = vpop.f32.mrb[0].mxu0
        %v1150 = vadd.f32 0.0, %v1149
        %v1151 = vpop.f32.mrb[0].mxu0
        %v1152 = vadd.f32 0.0, %v1151
        %1153 = vmatprep.mubr.f32.mxu0 0.0
        %1154 = vmatmul.mubr.f32.gmra.mrb[0].mxu0 %v1081
        %v1155 = vpop.f32.mrb[0].mxu0
        %v1156 = vadd.f32 0.0, %v1155
        %v1157 = vpop.f32.mrb[0].mxu0
        %v1158 = vadd.f32 0.0, %v1157
        %1159 = vdwg.mxu0
        %v1160 = vmul.f32 %v930, %v1150
        %v1161 = vmul.f32 %v931, %v1152
        %v1162 = vmul.f32 %v932, %v1156
        %v1163 = vmul.f32 %v933, %v1158
        %v1164 = vadd.f32 %v1160, %v400
        %v1165 = vadd.f32 %v1161, %v401
        %v1166 = vadd.f32 %v1162, %v402
        %v1167 = vadd.f32 %v1163, %v403
        %1168 = vst [vmem:[%s394] sm:$0xff] %v1164
        %1169 = vst [vmem:[%s394 + $0x8] sm:$0xff] %v1165
        %1170 = vst [vmem:[%s394 + $0x10] sm:$0xff] %v1166
        %1171 = vst [vmem:[%s394 + $0x18] sm:$0xff] %v1167
        %s1172 = sand.u32 %s249, 1
        %s1173 = scalar_lea.sflag [#allocation6], %s1172
        %s1174 = sand.u32 %s249, 1
        %s1175 = smul.addr %s1174, 32
        %s1176 = scalar_lea.vmem [#allocation10], %s1175
        // Predicated region
        $region73: #{tpu_custom_call.1} parent=59 // pred_check
          %p1177 = pneg %p259
        $region74: #{tpu_custom_call.1} parent=59 // pred_check_branch
          %1179 = sbr.rel (%p1177) target = $region76
        $region75: #{tpu_custom_call.1} parent=59 // pred_region
          %s1181 = ssub.s32 512, 512
          %1182 = vsyncadd %s1173, %s1181
          %s1183 = smul.addr %s26, 4
          %s1184 = smul.addr %s1183, 128
          %s1185 = scalar_lea.hbm %s10, %s1184
          %s1186 = sshll.u32 %s1176, 4
          %s1187 = int_to_ptr.vmem [resolvable:$true] %s1186
          %1192 = dma.vmem_to_hbm [thread:$0]  %s1187, 512, %s1185, %s1173, 256, 256, 16
        $region76: #{tpu_custom_call.1} parent=59 // pred_fallthru
          _
      $region60: #{tpu_custom_call.1} parent=5 // pred_fallthru
        _
      %p1193 = scmp.le.s32.totalorder 2, %s21
      // Predicated region
      $region77: #{tpu_custom_call.1} parent=5 // pred_check
        %p1194 = pneg %p1193
      $region78: #{tpu_custom_call.1} parent=5 // pred_check_branch
        %1196 = sbr.rel (%p1194) target = $region80
      $region79: #{tpu_custom_call.1} parent=5 // pred_region
        %s1197 = ssub.s32 %s21, 2
        // Predicated region
        $region81: #{tpu_custom_call.1} parent=79 // pred_check
          %p1198 = pneg %p265
        $region82: #{tpu_custom_call.1} parent=79 // pred_check_branch
          %1200 = sbr.rel (%p1198) target = $region84
        $region83: #{tpu_custom_call.1} parent=79 // pred_region
          %s1201 = sand.u32 %s250, 1
          %s1202 = scalar_lea.sflag [#allocation6], %s1201
          %s1203 = sand.u32 %s250, 1
          %s1204 = smul.addr %s1203, 32
          %s1205 = scalar_lea.vmem [#allocation10], %s1204
          %1206 = dma.done %s1202, 512
        $region84: #{tpu_custom_call.1} parent=79 // pred_fallthru
          _
      $region80: #{tpu_custom_call.1} parent=5 // pred_fallthru
        _
    $region6: #{tpu_custom_call.1} parent=1 // loop_footer
      %s25 = sadd.s32 1, %s21
    $region7: #{tpu_custom_call.1} parent=1 // loop_footer_branch
      %20 = sbr.rel target = $region3
    $region8: #{tpu_custom_call.1} parent=1 // loop_exit
      _
    %1207 = vsyncpa [#allocation5], 1
    %s1208 = scalar_lea.sflag [#allocation5], 1
    %1209 = vsyncpa %s1208, 1
    %1210 = vsyncpa [#allocation8], 1
    %1211 = vsyncpa [#allocation6], 1
    %s1212 = scalar_lea.sflag [#allocation6], 1
    %1213 = vsyncpa %s1212, 1

</llo_original>
